<compile_context>
chip_gen: v6e
topology: v6e:2x2x1
jax: 0.10.0
libtpu: 0.0.40
codegen_flags: <defaults>
</compile_context>

<pallas_src>
import math

import jax
import jax.numpy as jnp
from jax.experimental import pallas as pl
from jax.experimental.pallas import tpu as pltpu


LANES = 128
DEFAULT_LANE_TILE = 2048          # sweep 2048-8192 for production ray batches
# contribution of one zero-padded element to the alpha prior sum (exact only
# because elementwise slabs pad with 0.0; see _elem_slab).
_ALPHA_PRIOR_PAD = math.log(0.11) + 2.20727


def _round_up(x, m):
    return (x + m - 1) // m * m


# ----------------------------------------------------------------------------
# Wrapper-side layout plumbing: lane-dense, sublane-UNPADDED slabs.
# ----------------------------------------------------------------------------

def _norm_slab(x, dim, lane_tile):
    """Tensor with a size-C norm axis at `dim` -> (C, W) slab: channels on
    sublanes (no padding), points on lanes (zero-padded to a lane_tile
    multiple).  Returns (slab, n_points, n_tiles)."""
    x = jnp.asarray(x, jnp.float32)
    x = jnp.moveaxis(x, dim, -1)
    c = x.shape[-1]
    xt = x.reshape(-1, c).T                     # (C, P): points lane-dense
    p = xt.shape[1]
    w = _round_up(max(p, 1), lane_tile)
    if w != p:                                  # skip pad when already aligned
        xt = jnp.pad(xt, ((0, 0), (0, w - p)))
    return xt, p, w // lane_tile


def _elem_slab(x, lane_tile, pad_value=0.0):
    """Arbitrary tensor -> (8, W) slab of its flattened elements (row-major).
    Padding uses `pad_value` (corrections in the finalizers rely on it)."""
    xf = jnp.asarray(x, jnp.float32).reshape(-1)
    e = xf.shape[0]
    tot = _round_up(max(e, 1), 8 * lane_tile)
    if tot != e:
        xf = jnp.pad(xf, (0, tot - e), constant_values=pad_value)
    slab = xf.reshape(8, tot // 8)
    return slab, e, (tot // 8) // lane_tile


def _mask_slab(mask, width):
    """Boolean ray mask -> (1, W) f32 slab (no sublane padding)."""
    mf = jnp.asarray(mask, jnp.float32).reshape(1, -1)
    p = mf.shape[1]
    assert p <= width, (p, width)
    if width != p:
        mf = jnp.pad(mf, ((0, 0), (0, width - p)))
    return mf


# ----------------------------------------------------------------------------
# In-kernel helpers: lane folding + per-tile partial producers.
# Each tile_fn takes refs of shape (rows, lane_tile) and returns a tuple of
# (rows_i, 128) lane-folded partial-sum arrays.
# ----------------------------------------------------------------------------

def _fold_lanes(x):
    """(R, T) -> (R, 128): fold the lane tile down to one 128-lane width with
    static vreg-aligned slices (pure VPU adds; no cross-lane XLU reduce)."""
    t = x.shape[-1]
    acc = x[:, :LANES]
    for i in range(1, t // LANES):
        acc = acc + x[:, i * LANES:(i + 1) * LANES]
    return acc


def _tile_norm(x_ref):
    x = x_ref[...]                                            # (C, T)
    n = jnp.sqrt(jnp.sum(x * x, axis=0, keepdims=True))       # (1, T)
    return (_fold_lanes(n),)


def _tile_norm_of_sum(a_ref, b_ref):
    x = a_ref[...] + b_ref[...]                               # fw + bw in-kernel
    n = jnp.sqrt(jnp.sum(x * x, axis=0, keepdims=True))
    return (_fold_lanes(n),)


def _tile_eikonal(x_ref):
    x = x_ref[...]
    n = jnp.sqrt(jnp.sum(x * x, axis=0, keepdims=True))
    return (_fold_lanes((n - 1.0) ** 2),)


def _tile_sqdiff(a_ref, b_ref):
    d = a_ref[...] - b_ref[...]
    return (_fold_lanes(d * d),)


def _tile_smooth_l1(a_ref, b_ref):
    d = a_ref[...] - b_ref[...]
    ad = jnp.abs(d)
    return (_fold_lanes(jnp.where(ad < 1.0, 0.5 * d * d, ad - 0.5)),)


def _tile_alpha_prior(a_ref):
    a = a_ref[...]
    # fused log: log(0.1+a) + log(1.1-a) == log((0.1+a)*(1.1-a)); one EUP push
    return (_fold_lanes(jnp.log((0.1 + a) * (1.1 - a)) + 2.20727),)


def _tile_hinge_prior(s_ref):
    s = s_ref[...]
    return (_fold_lanes(jnp.maximum(0.0005 - s, 0.0)),)


def _tile_masked_img(p_ref, g_ref, m_ref):
    d = p_ref[...] - g_ref[...]                               # (C, T)
    m = m_ref[...]                                            # (1, T)
    return (_fold_lanes(d * d * m), _fold_lanes(m))           # (C,128), (1,128)


# ----------------------------------------------------------------------------
# Fused-loss builder: one pallas_call for every loss.
# ----------------------------------------------------------------------------

class _FusedLossBuilder:
    def __init__(self, lane_tile, num_cores=1):
        assert lane_tile % LANES == 0 and lane_tile >= LANES
        assert num_cores >= 1
        self.lane_tile = lane_tile
        self.num_cores = num_cores
        self._slabs = []
        self._slab_tiles = []
        self._losses = []
        self._n_acc = 0

    def add_slab(self, slab, n_tiles):
        assert slab.ndim == 2 and slab.shape[1] == n_tiles * self.lane_tile
        self._slabs.append(slab)
        self._slab_tiles.append(int(n_tiles))
        return len(self._slabs) - 1

    def add_loss(self, name, weight, slab_ids, tile_fn, part_rows, finalize_fn):
        tiles = [self._slab_tiles[i] for i in slab_ids]
        # paired slabs must tile identically (blocks are indexed by the same g)
        assert len(set(tiles)) == 1, (name, tiles)
        acc0 = _round_up(self._n_acc, 8)           # vreg-aligned accumulator rows
        self._losses.append(dict(
            name=name, weight=float(weight), slab_ids=tuple(slab_ids),
            tile_fn=tile_fn, finalize_fn=finalize_fn,
            part_rows=tuple(int(r) for r in part_rows),
            acc0=acc0, t_active=tiles[0]))
        self._n_acc = acc0 + sum(int(r) for r in part_rows)

    def run(self):
        lane_tile = self.lane_tile
        num_cores = self.num_cores
        slabs, slab_tiles = self._slabs, self._slab_tiles
        losses = self._losses
        n_in = len(slabs)
        grid_t = max(slab_tiles)
        tpc = -(-grid_t // num_cores)              # tiles per core
        total_tiles = num_cores * tpc
        n_acc_pad = _round_up(max(self._n_acc, 8), 8)

        # fully-active (unguarded) losses first for cleaner steady-state code
        kernel_losses = sorted(losses, key=lambda l: l['t_active'] < total_tiles)

        def kernel(*refs):
            in_refs = refs[:n_in]
            out_ref = refs[n_in]                   # (n_acc_pad, 128) accumulator
            c = pl.program_id(0)
            t = pl.program_id(1)
            g = c * tpc + t                        # global tile id

            @pl.when(t == 0)
            def _init():
                out_ref[...] = jnp.zeros_like(out_ref)

            for loss in kernel_losses:
                def accumulate(loss=loss):
                    parts = loss['tile_fn'](
                        *[in_refs[i] for i in loss['slab_ids']])
                    r = loss['acc0']
                    for part, nr in zip(parts, loss['part_rows']):
                        assert part.shape == (nr, LANES), (part.shape, nr)
                        cur = out_ref[pl.ds(r, nr), :]
                        out_ref[pl.ds(r, nr), :] = cur + part
                        r += nr
                if loss['t_active'] >= total_tiles:
                    accumulate()
                else:
                    pl.when(g < loss['t_active'])(accumulate)

        in_specs = []
        for ti, slab in zip(slab_tiles, slabs):
            rows = slab.shape[0]
            if ti >= total_tiles:
                imap = lambda c, t, tpc=tpc: (0, c * tpc + t)
            else:
                # clamp -> resident block never changes after its last tile
                imap = lambda c, t, tpc=tpc, last=ti - 1: (
                    0, jnp.minimum(c * tpc + t, last))
            in_specs.append(pl.BlockSpec((rows, lane_tile), imap))

        out_spec = pl.BlockSpec((n_acc_pad, LANES), lambda c, t: (c, 0))

        # double-buffered inputs + output accumulator; cap within v7x's 64 MiB
        vmem_need = (2 * sum(s.shape[0] for s in slabs) * lane_tile * 4
                     + 2 * n_acc_pad * LANES * 4)
        vmem_limit = int(min(max(2 * vmem_need, 32 * 1024 * 1024),
                             48 * 1024 * 1024))

        raw = pl.pallas_call(
            kernel,
            out_shape=jax.ShapeDtypeStruct((num_cores * n_acc_pad, LANES),
                                           jnp.float32),
            grid_spec=pltpu.PrefetchScalarGridSpec(
                num_scalar_prefetch=0,
                grid=(num_cores, tpc),
                in_specs=in_specs,
                out_specs=out_spec),
            compiler_params=pltpu.CompilerParams(
                dimension_semantics=("parallel", "arbitrary"),
                vmem_limit_bytes=vmem_limit),
        )(*slabs)

        # tiny cross-core / cross-lane reduction + finalize in the wrapper
        row_sums = raw.reshape(num_cores, n_acc_pad, LANES).sum(axis=(0, 2))
        stats = {}
        total = jnp.float32(0.0)
        for loss in losses:
            vals = []
            r = loss['acc0']
            for nr in loss['part_rows']:
                vals.append(jnp.sum(row_sums[r:r + nr]))
                r += nr
            stat = loss['finalize_fn'](*vals)
            stats[loss['name']] = stat
            total = total + loss['weight'] * stat
        return stats, total


# ----------------------------------------------------------------------------
# NetworkWrapper.forward equivalent (loss aggregation)
# ----------------------------------------------------------------------------

DEFAULT_CFG = dict(
    bw_loss_weight=1.0,
    grad_loss_weigth=0.1,
    normal_loss_weight=0.1,
    alpha_loss_weight=0.01,
    num_trained_mask=0,
    train_bgfg=True,
)


def network_wrapper_forward(ret, batch, cfg=DEFAULT_CFG,
                            lane_tile=DEFAULT_LANE_TILE, num_cores=1):
    """Loss aggregation of NetworkWrapper.forward, fused into ONE Pallas kernel.

    NOTE: batch['part_type'] / batch['iter_step'] / batch['latent_index'] are
    treated as static Python scalars (the PyTorch reference branches on them in
    Python); loss weights are static config.  Set num_cores=2 on v7x (dual
    TensorCore) to split the lane-tile grid across both cores.
    """
    b = _FusedLossBuilder(lane_tile, num_cores)

    if 'resd' in ret:
        s, p, t = _norm_slab(ret['resd'], 2, lane_tile)
        i = b.add_slab(s, t)
        b.add_loss('offset_loss', 0.01, (i,), _tile_norm, (1,),
                   lambda acc, p=p: acc / p)

    if 'fw_resd' in ret:
        sf, p, t = _norm_slab(ret['fw_resd'], 2, lane_tile)
        sb, _, tb = _norm_slab(ret['bw_resd'], 2, lane_tile)
        i0 = b.add_slab(sf, t)
        i1 = b.add_slab(sb, tb)
        b.add_loss('fwresd_loss', 1.0, (i0, i1), _tile_norm_of_sum, (1,),
                   lambda acc, p=p: acc / p)

    if 'pred_pbw' in ret:
        num_joints = ret['pred_pbw'].shape[-1]
        if int(batch['part_type']) == 0:
            scale = num_joints / 24.0
        elif int(batch['part_type']) == 2:
            scale = num_joints / 16.0
        elif num_joints > 24:
            scale = num_joints / 24.0
        else:
            scale = 1.0
        sa, e, t = _elem_slab(ret['pred_pbw'], lane_tile)
        sb2, _, tb = _elem_slab(ret['smpl_tbw'], lane_tile)
        i0 = b.add_slab(sa, t)
        i1 = b.add_slab(sb2, tb)
        b.add_loss('tbw_loss', cfg['bw_loss_weight'], (i0, i1),
                   _tile_sqdiff, (8,),
                   lambda acc, e=e, sc=scale: acc / e * sc)

    # TODO(synk): crit.sdf_mask_crit ('msk_sdf'), crit.normal_crit
    # ('surf_normal') and crit.elastic_crit ('resd_jacobian') are external loss
    # modules not defined by this file; they are not reproduced here.

    if 'gradients' in ret:
        s, p, t = _norm_slab(ret['gradients'], 2, lane_tile)
        npad = t * lane_tile - p        # each zero-padded point adds exactly 1.0
        i = b.add_slab(s, t)
        b.add_loss('grad_loss', cfg['grad_loss_weigth'], (i,),
                   _tile_eikonal, (1,),
                   lambda acc, p=p, npad=npad: (acc - npad) / p)

    if 'full_body_gradients' in ret:
        s, p, t = _norm_slab(ret['full_body_gradients'], 2, lane_tile)
        npad = t * lane_tile - p
        i = b.add_slab(s, t)
        b.add_loss('fbgrad_loss', 0.1, (i,), _tile_eikonal, (1,),
                   lambda acc, p=p, npad=npad: (acc - npad) / p)

    if 'smooth_sdf' in ret:
        s, p, t = _norm_slab(ret['smooth_sdf'], 1, lane_tile)   # torch: dim=1
        i = b.add_slab(s, t)
        b.add_loss('bsdf_loss', 0.1, (i,), _tile_norm, (1,),
                   lambda acc, p=p: acc / p)

    if 'smooth_normal' in ret and int(batch['iter_step']) > 10000:
        s, p, t = _norm_slab(ret['smooth_normal'], 1, lane_tile)  # torch: dim=1
        i = b.add_slab(s, t)
        b.add_loss('snormal_loss', cfg['normal_loss_weight'], (i,),
                   _tile_norm, (1,), lambda acc, p=p: acc / p)

    if 'observed_gradients' in ret:
        s, p, t = _norm_slab(ret['observed_gradients'], 2, lane_tile)
        npad = t * lane_tile - p
        i = b.add_slab(s, t)
        b.add_loss('ograd_loss', 0.1, (i,), _tile_eikonal, (1,),
                   lambda acc, p=p, npad=npad: (acc - npad) / p)

    if 'pbw' in ret:
        sa, e, t = _elem_slab(ret['pbw'], lane_tile)
        sb2, _, tb = _elem_slab(ret['tbw'], lane_tile)
        i0 = b.add_slab(sa, t)
        i1 = b.add_slab(sb2, tb)
        b.add_loss('bw_loss', 1.0, (i0, i1), _tile_smooth_l1, (8,),
                   lambda acc, e=e: acc / e)

    if 'acc_alpha' in ret:
        s, e, t = _elem_slab(ret['acc_alpha'], lane_tile)
        npad = s.shape[0] * s.shape[1] - e
        # each zero pad contributes exactly _ALPHA_PRIOR_PAD (pad_value == 0.0)
        i = b.add_slab(s, t)
        b.add_loss('alpha_prior_loss', cfg['alpha_loss_weight'], (i,),
                   _tile_alpha_prior, (8,),
                   lambda acc, e=e, c=npad * _ALPHA_PRIOR_PAD: (acc - c) / e)

    if 'prior_sdf' in ret:
        # pad with 1.0 so padded elements contribute exactly 0 to the hinge
        s, e, t = _elem_slab(ret['prior_sdf'], lane_tile, pad_value=1.0)
        i = b.add_slab(s, t)
        b.add_loss('hprior_loss', 1.0, (i,), _tile_hinge_prior, (8,),
                   lambda acc, e=e: acc / e)

    # image losses: read batch['rgb'] once, share its slab between the masked
    # MSE (rgb_map) and the full MSE (rgb0).
    rgb_slab, n_rays, t_rgb = _norm_slab(batch['rgb'], -1, lane_tile)
    i_rgb = b.add_slab(rgb_slab, t_rgb)
    n_ch = batch['rgb'].shape[-1]

    pm_slab, _, t_pm = _norm_slab(ret['rgb_map'], -1, lane_tile)
    assert pm_slab.shape == rgb_slab.shape and t_pm == t_rgb
    i_pm = b.add_slab(pm_slab, t_rgb)
    m_slab = _mask_slab(batch['mask_at_box'], rgb_slab.shape[1])
    i_m = b.add_slab(m_slab, t_rgb)
    # NOTE: torch would return NaN for an all-false mask; we guard with max(.,1)
    b.add_loss('img_loss', 1.0, (i_pm, i_rgb, i_m), _tile_masked_img,
               (rgb_slab.shape[0], 1),
               lambda sq, cnt, n_ch=n_ch: sq / (jnp.maximum(cnt, 1.0) * n_ch))

    if 'rgb0' in ret:
        r0_slab, _, t_r0 = _norm_slab(ret['rgb0'], -1, lane_tile)
        assert r0_slab.shape == rgb_slab.shape and t_r0 == t_rgb
        i_r0 = b.add_slab(r0_slab, t_rgb)
        e_rgb = n_rays * n_ch
        b.add_loss('img_loss0', 1.0, (i_r0, i_rgb), _tile_sqdiff,
                   (rgb_slab.shape[0],), lambda acc, e=e_rgb: acc / e)

    scalar_stats, loss = b.run()
    scalar_stats['loss'] = loss
    image_stats = {}
    return ret, loss, scalar_stats, image_stats


# ----------------------------------------------------------------------------
# Pure-JAX reference (torch semantics) for the correctness check
# ----------------------------------------------------------------------------

def _ref_forward(ret, batch, cfg=DEFAULT_CFG):
    stats = {}
    loss = jnp.float32(0.0)

    def nrm(x, axis):
        return jnp.sqrt(jnp.sum(jnp.asarray(x, jnp.float32) ** 2, axis=axis))

    if 'resd' in ret:
        v = jnp.mean(nrm(ret['resd'], 2)); stats['offset_loss'] = v
        loss = loss + 0.01 * v
    if 'fw_resd' in ret:
        v = jnp.mean(nrm(ret['fw_resd'] + ret['bw_resd'], 2))
        stats['fwresd_loss'] = v; loss = loss + v
    if 'pred_pbw' in ret:
        nj = ret['pred_pbw'].shape[-1]
        base = jnp.mean((ret['pred_pbw'] - ret['smpl_tbw']) ** 2)
        if int(batch['part_type']) == 0:
            v = base * nj / 24
        elif int(batch['part_type']) == 2:
            v = base * nj / 16
        elif nj > 24:
            v = base * nj / 24
        else:
            v = base
        stats['tbw_loss'] = v; loss = loss + v * cfg['bw_loss_weight']
    if 'gradients' in ret:
        v = jnp.mean((nrm(ret['gradients'], 2) - 1.0) ** 2)
        stats['grad_loss'] = v; loss = loss + cfg['grad_loss_weigth'] * v
    if 'full_body_gradients' in ret:
        v = jnp.mean((nrm(ret['full_body_gradients'], 2) - 1.0) ** 2)
        stats['fbgrad_loss'] = v; loss = loss + 0.1 * v
    if 'smooth_sdf' in ret:
        v = jnp.mean(nrm(ret['smooth_sdf'], 1)); stats['bsdf_loss'] = v
        loss = loss + 0.1 * v
    if 'smooth_normal' in ret and int(batch['iter_step']) > 10000:
        v = jnp.mean(nrm(ret['smooth_normal'], 1)); stats['snormal_loss'] = v
        loss = loss + cfg['normal_loss_weight'] * v
    if 'observed_gradients' in ret:
        v = jnp.mean((nrm(ret['observed_gradients'], 2) - 1.0) ** 2)
        stats['ograd_loss'] = v; loss = loss + 0.1 * v
    if 'pbw' in ret:
        d = ret['pbw'] - ret['tbw']; ad = jnp.abs(d)
        v = jnp.mean(jnp.where(ad < 1.0, 0.5 * d * d, ad - 0.5))
        stats['bw_loss'] = v; loss = loss + v
    if 'acc_alpha' in ret:
        a = ret['acc_alpha']
        v = jnp.mean(jnp.log(0.1 + a) + jnp.log(0.1 + 1.0 - a) + 2.20727)
        stats['alpha_prior_loss'] = v; loss = loss + v * cfg['alpha_loss_weight']
    if 'prior_sdf' in ret:
        v = jnp.mean(jnp.maximum(0.0005 - ret['prior_sdf'], 0.0))
        stats['hprior_loss'] = v; loss = loss + v
    m = batch['mask_at_box']
    v = jnp.mean((ret['rgb_map'][m] - batch['rgb'][m]) ** 2)
    stats['img_loss'] = v; loss = loss + v
    if 'rgb0' in ret:
        v = jnp.mean((ret['rgb0'] - batch['rgb']) ** 2)
        stats['img_loss0'] = v; loss = loss + v
    stats['loss'] = loss
    return loss, stats


# ----------------------------------------------------------------------------
# Demo / self-test
# ----------------------------------------------------------------------------

if __name__ == "__main__":
    key = jax.random.PRNGKey(0)
    ks = jax.random.split(key, 20)

    B, N, NJ = 2, 64, 24

    # synthesized renderer output (the renderer is an external sub-network)
    ret = {
        'resd': 0.01 * jax.random.normal(ks[0], (B, N, 3), jnp.float32),
        'fw_resd': 0.01 * jax.random.normal(ks[1], (B, N, 3), jnp.float32),
        'bw_resd': 0.01 * jax.random.normal(ks[2], (B, N, 3), jnp.float32),
        'pred_pbw': jax.nn.softmax(jax.random.normal(ks[3], (B, N, NJ), jnp.float32), -1),
        'smpl_tbw': jax.nn.softmax(jax.random.normal(ks[4], (B, N, NJ), jnp.float32), -1),
        'gradients': jax.random.normal(ks[5], (B, N, 3), jnp.float32),
        'full_body_gradients': jax.random.normal(ks[6], (B, N, 3), jnp.float32),
        'smooth_sdf': 0.1 * jax.random.normal(ks[7], (N, 3), jnp.float32),
        'smooth_normal': 0.1 * jax.random.normal(ks[8], (N, 3), jnp.float32),
        'observed_gradients': jax.random.normal(ks[9], (B, N, 3), jnp.float32),
        'pbw': jax.nn.softmax(jax.random.normal(ks[10], (B, NJ, N), jnp.float32), 1),
        'tbw': jax.nn.softmax(jax.random.normal(ks[11], (B, NJ, N), jnp.float32), 1),
        'acc_alpha': jax.nn.sigmoid(jax.random.normal(ks[12], (B, N), jnp.float32)),
        'prior_sdf': 0.01 * jax.random.normal(ks[13], (B, N), jnp.float32),
        'rgb_map': jax.nn.sigmoid(jax.random.normal(ks[14], (B, N, 3), jnp.float32)),
        'rgb0': jax.nn.sigmoid(jax.random.normal(ks[15], (B, N, 3), jnp.float32)),
    }

    mask = jax.random.bernoulli(ks[16], 0.5, (B, N))
    mask = mask.at[0, 0].set(True)            # ensure non-empty mask
    batch = {
        'part_type': 0,
        'latent_index': 5,
        'iter_step': 20000,
        'mask_at_box': mask,
        'rgb': jax.nn.sigmoid(jax.random.normal(ks[17], (B, N, 3), jnp.float32)),
    }

    ref_loss, ref_stats = _ref_forward(ret, batch)
    ref_loss = jax.block_until_ready(ref_loss)

    # exercise multi-tile grids, the guarded/clamped path, the 2-core split,
    # and the big-tile single-step path
    for lane_tile, num_cores in [(128, 1), (128, 2), (1024, 2), (512, 1)]:
        _, loss, stats, _ = network_wrapper_forward(
            ret, batch, lane_tile=lane_tile, num_cores=num_cores)
        loss = jax.block_until_ready(loss)
        assert set(stats.keys()) == set(ref_stats.keys())
        for k, v in ref_stats.items():
            got = stats[k]
            assert jnp.allclose(got, v, rtol=2e-4, atol=2e-5), (
                lane_tile, num_cores, k, float(got), float(v))

    print("KERNEL_OK")
</pallas_src>

<mosaic_0001>
module attributes {stable_mosaic.version = 11 : i64} {
  func.func @kernel(%arg0: i32, %arg1: i32, %arg2: memref<3x128xf32, #tpu.memory_space<vmem>>, %arg3: memref<3x128xf32, #tpu.memory_space<vmem>>, %arg4: memref<3x128xf32, #tpu.memory_space<vmem>>, %arg5: memref<8x128xf32, #tpu.memory_space<vmem>>, %arg6: memref<8x128xf32, #tpu.memory_space<vmem>>, %arg7: memref<3x128xf32, #tpu.memory_space<vmem>>, %arg8: memref<3x128xf32, #tpu.memory_space<vmem>>, %arg9: memref<3x128xf32, #tpu.memory_space<vmem>>, %arg10: memref<3x128xf32, #tpu.memory_space<vmem>>, %arg11: memref<3x128xf32, #tpu.memory_space<vmem>>, %arg12: memref<8x128xf32, #tpu.memory_space<vmem>>, %arg13: memref<8x128xf32, #tpu.memory_space<vmem>>, %arg14: memref<8x128xf32, #tpu.memory_space<vmem>>, %arg15: memref<8x128xf32, #tpu.memory_space<vmem>>, %arg16: memref<3x128xf32, #tpu.memory_space<vmem>>, %arg17: memref<3x128xf32, #tpu.memory_space<vmem>>, %arg18: memref<1x128xf32, #tpu.memory_space<vmem>>, %arg19: memref<3x128xf32, #tpu.memory_space<vmem>>, %arg20: memref<104x128xf32, #tpu.memory_space<vmem>>) attributes {dimension_semantics = [#tpu.dimension_semantics<parallel>, #tpu.dimension_semantics<arbitrary>], iteration_bounds = array<i64: 1, 3>, scalar_prefetch = 0 : i64, scratch_operands = 0 : i64, tpu.core_type = #tpu.core_type<tc>, window_params = [{transform_indices = @transform_0, window_bounds = array<i64: 3, 128>}, {transform_indices = @transform_1, window_bounds = array<i64: 3, 128>}, {transform_indices = @transform_2, window_bounds = array<i64: 3, 128>}, {transform_indices = @transform_3, window_bounds = array<i64: 8, 128>}, {transform_indices = @transform_4, window_bounds = array<i64: 8, 128>}, {transform_indices = @transform_5, window_bounds = array<i64: 3, 128>}, {transform_indices = @transform_6, window_bounds = array<i64: 3, 128>}, {transform_indices = @transform_7, window_bounds = array<i64: 3, 128>}, {transform_indices = @transform_8, window_bounds = array<i64: 3, 128>}, {transform_indices = @transform_9, window_bounds = array<i64: 3, 128>}, {transform_indices = @transform_10, window_bounds = array<i64: 8, 128>}, {transform_indices = @transform_11, window_bounds = array<i64: 8, 128>}, {transform_indices = @transform_12, window_bounds = array<i64: 8, 128>}, {transform_indices = @transform_13, window_bounds = array<i64: 8, 128>}, {transform_indices = @transform_14, window_bounds = array<i64: 3, 128>}, {transform_indices = @transform_15, window_bounds = array<i64: 3, 128>}, {transform_indices = @transform_16, window_bounds = array<i64: 1, 128>}, {transform_indices = @transform_17, window_bounds = array<i64: 3, 128>}, {transform_indices = @transform_18, window_bounds = array<i64: 104, 128>}]} {
    %c3_i32 = arith.constant 3 : i32
    %0 = arith.muli %arg0, %c3_i32 : i32
    %1 = arith.addi %0, %arg1 : i32
    %c0_i32 = arith.constant 0 : i32
    %2 = arith.cmpi eq, %arg1, %c0_i32 : i32
    %3 = arith.extui %2 : i1 to i32
    %c0_i32_0 = arith.constant 0 : i32
    %4 = arith.cmpi ne, %3, %c0_i32_0 : i32
    scf.if %4 {
      %cst_37 = arith.constant 0.000000e+00 : f32
      %60 = vector.broadcast %cst_37 : f32 to vector<104x128xf32>
      %c0_38 = arith.constant 0 : index
      %c0_39 = arith.constant 0 : index
      %61 = vector.load %arg20[%c0_38, %c0_39] : memref<104x128xf32, #tpu.memory_space<vmem>>, vector<104x128xf32>
      tpu.vector_store %arg20[%c0_38, %c0_39], %60 {strides = array<i32>} : memref<104x128xf32, #tpu.memory_space<vmem>>, vector<104x128xf32>,
    } else {
    }
    %c0 = arith.constant 0 : index
    %c0_1 = arith.constant 0 : index
    %5 = vector.load %arg5[%c0, %c0_1] : memref<8x128xf32, #tpu.memory_space<vmem>>, vector<8x128xf32>
    %c0_2 = arith.constant 0 : index
    %c0_3 = arith.constant 0 : index
    %6 = vector.load %arg6[%c0_2, %c0_3] : memref<8x128xf32, #tpu.memory_space<vmem>>, vector<8x128xf32>
    %7 = arith.subf %5, %6 : vector<8x128xf32>
    %8 = arith.mulf %7, %7 : vector<8x128xf32>
    %c16 = arith.constant 16 : index
    %c0_4 = arith.constant 0 : index
    %9 = vector.load %arg20[%c16, %c0_4] : memref<104x128xf32, #tpu.memory_space<vmem>>, vector<8x128xf32>
    %10 = arith.addf %9, %8 : vector<8x128xf32>
    %c16_5 = arith.constant 16 : index
    %c0_6 = arith.constant 0 : index
    %11 = vector.load %arg20[%c16_5, %c0_6] : memref<104x128xf32, #tpu.memory_space<vmem>>, vector<8x128xf32>
    tpu.vector_store %arg20[%c16_5, %c0_6], %10 {strides = array<i32>} : memref<104x128xf32, #tpu.memory_space<vmem>>, vector<8x128xf32>,
    %c0_7 = arith.constant 0 : index
    %c0_8 = arith.constant 0 : index
    %12 = vector.load %arg12[%c0_7, %c0_8] : memref<8x128xf32, #tpu.memory_space<vmem>>, vector<8x128xf32>
    %c0_9 = arith.constant 0 : index
    %c0_10 = arith.constant 0 : index
    %13 = vector.load %arg13[%c0_9, %c0_10] : memref<8x128xf32, #tpu.memory_space<vmem>>, vector<8x128xf32>
    %14 = arith.subf %12, %13 : vector<8x128xf32>
    %15 = math.absf %14 : vector<8x128xf32>
    %cst = arith.constant 1.000000e+00 : f32
    %16 = vector.broadcast %cst : f32 to vector<8x128xf32>
    %17 = arith.cmpf olt, %15, %16 : vector<8x128xf32>
    %cst_11 = arith.constant 5.000000e-01 : f32
    %18 = vector.broadcast %cst_11 : f32 to vector<8x128xf32>
    %19 = arith.mulf %18, %14 : vector<8x128xf32>
    %20 = arith.mulf %19, %14 : vector<8x128xf32>
    %cst_12 = arith.constant 5.000000e-01 : f32
    %21 = vector.broadcast %cst_12 : f32 to vector<8x128xf32>
    %22 = arith.subf %15, %21 : vector<8x128xf32>
    %23 = arith.select %17, %20, %22 : vector<8x128xi1>, vector<8x128xf32>
    %c64 = arith.constant 64 : index
    %c0_13 = arith.constant 0 : index
    %24 = vector.load %arg20[%c64, %c0_13] : memref<104x128xf32, #tpu.memory_space<vmem>>, vector<8x128xf32>
    %25 = arith.addf %24, %23 : vector<8x128xf32>
    %c64_14 = arith.constant 64 : index
    %c0_15 = arith.constant 0 : index
    %26 = vector.load %arg20[%c64_14, %c0_15] : memref<104x128xf32, #tpu.memory_space<vmem>>, vector<8x128xf32>
    tpu.vector_store %arg20[%c64_14, %c0_15], %25 {strides = array<i32>} : memref<104x128xf32, #tpu.memory_space<vmem>>, vector<8x128xf32>,
    %c1_i32 = arith.constant 1 : i32
    %27 = arith.cmpi slt, %1, %c1_i32 : i32
    %28 = arith.extui %27 : i1 to i32
    %c0_i32_16 = arith.constant 0 : i32
    %29 = arith.cmpi ne, %28, %c0_i32_16 : i32
    scf.if %29 {
      %c0_37 = arith.constant 0 : index
      %c0_38 = arith.constant 0 : index
      %60 = vector.load %arg2[%c0_37, %c0_38] : memref<3x128xf32, #tpu.memory_space<vmem>>, vector<3x128xf32>
      %61 = arith.mulf %60, %60 : vector<3x128xf32>
      %cst_39 = arith.constant dense<0.000000e+00> : vector<128xf32>
      %62 = vector.multi_reduction <add>, %61, %cst_39 [0] : vector<3x128xf32> to vector<128xf32>
      %63 = vector.shape_cast %62 : vector<128xf32> to vector<1x128xf32>
      %64 = math.sqrt %63 : vector<1x128xf32>
      %c0_40 = arith.constant 0 : index
      %c0_41 = arith.constant 0 : index
      %65 = vector.load %arg20[%c0_40, %c0_41] : memref<104x128xf32, #tpu.memory_space<vmem>>, vector<1x128xf32>
      %66 = arith.addf %65, %64 : vector<1x128xf32>
      %c0_42 = arith.constant 0 : index
      %c0_43 = arith.constant 0 : index
      %67 = vector.load %arg20[%c0_42, %c0_43] : memref<104x128xf32, #tpu.memory_space<vmem>>, vector<1x128xf32>
      tpu.vector_store %arg20[%c0_42, %c0_43], %66 {strides = array<i32>} : memref<104x128xf32, #tpu.memory_space<vmem>>, vector<1x128xf32>,
    } else {
    }
    %c1_i32_17 = arith.constant 1 : i32
    %30 = arith.cmpi slt, %1, %c1_i32_17 : i32
    %31 = arith.extui %30 : i1 to i32
    %c0_i32_18 = arith.constant 0 : i32
    %32 = arith.cmpi ne, %31, %c0_i32_18 : i32
    scf.if %32 {
      %c0_37 = arith.constant 0 : index
      %c0_38 = arith.constant 0 : index
      %60 = vector.load %arg3[%c0_37, %c0_38] : memref<3x128xf32, #tpu.memory_space<vmem>>, vector<3x128xf32>
      %c0_39 = arith.constant 0 : index
      %c0_40 = arith.constant 0 : index
      %61 = vector.load %arg4[%c0_39, %c0_40] : memref<3x128xf32, #tpu.memory_space<vmem>>, vector<3x128xf32>
      %62 = arith.addf %60, %61 : vector<3x128xf32>
      %63 = arith.mulf %62, %62 : vector<3x128xf32>
      %cst_41 = arith.constant dense<0.000000e+00> : vector<128xf32>
      %64 = vector.multi_reduction <add>, %63, %cst_41 [0] : vector<3x128xf32> to vector<128xf32>
      %65 = vector.shape_cast %64 : vector<128xf32> to vector<1x128xf32>
      %66 = math.sqrt %65 : vector<1x128xf32>
      %c8 = arith.constant 8 : index
      %c0_42 = arith.constant 0 : index
      %67 = vector.load %arg20[%c8, %c0_42] : memref<104x128xf32, #tpu.memory_space<vmem>>, vector<1x128xf32>
      %68 = arith.addf %67, %66 : vector<1x128xf32>
      %c8_43 = arith.constant 8 : index
      %c0_44 = arith.constant 0 : index
      %69 = vector.load %arg20[%c8_43, %c0_44] : memref<104x128xf32, #tpu.memory_space<vmem>>, vector<1x128xf32>
      tpu.vector_store %arg20[%c8_43, %c0_44], %68 {strides = array<i32>} : memref<104x128xf32, #tpu.memory_space<vmem>>, vector<1x128xf32>,
    } else {
    }
    %c1_i32_19 = arith.constant 1 : i32
    %33 = arith.cmpi slt, %1, %c1_i32_19 : i32
    %34 = arith.extui %33 : i1 to i32
    %c0_i32_20 = arith.constant 0 : i32
    %35 = arith.cmpi ne, %34, %c0_i32_20 : i32
    scf.if %35 {
      %c0_37 = arith.constant 0 : index
      %c0_38 = arith.constant 0 : index
      %60 = vector.load %arg7[%c0_37, %c0_38] : memref<3x128xf32, #tpu.memory_space<vmem>>, vector<3x128xf32>
      %61 = arith.mulf %60, %60 : vector<3x128xf32>
      %cst_39 = arith.constant dense<0.000000e+00> : vector<128xf32>
      %62 = vector.multi_reduction <add>, %61, %cst_39 [0] : vector<3x128xf32> to vector<128xf32>
      %63 = vector.shape_cast %62 : vector<128xf32> to vector<1x128xf32>
      %64 = math.sqrt %63 : vector<1x128xf32>
      %cst_40 = arith.constant 1.000000e+00 : f32
      %65 = vector.broadcast %cst_40 : f32 to vector<1x128xf32>
      %66 = arith.subf %64, %65 : vector<1x128xf32>
      %67 = arith.mulf %66, %66 : vector<1x128xf32>
      %c24 = arith.constant 24 : index
      %c0_41 = arith.constant 0 : index
      %68 = vector.load %arg20[%c24, %c0_41] : memref<104x128xf32, #tpu.memory_space<vmem>>, vector<1x128xf32>
      %69 = arith.addf %68, %67 : vector<1x128xf32>
      %c24_42 = arith.constant 24 : index
      %c0_43 = arith.constant 0 : index
      %70 = vector.load %arg20[%c24_42, %c0_43] : memref<104x128xf32, #tpu.memory_space<vmem>>, vector<1x128xf32>
      tpu.vector_store %arg20[%c24_42, %c0_43], %69 {strides = array<i32>} : memref<104x128xf32, #tpu.memory_space<vmem>>, vector<1x128xf32>,
    } else {
    }
    %c1_i32_21 = arith.constant 1 : i32
    %36 = arith.cmpi slt, %1, %c1_i32_21 : i32
    %37 = arith.extui %36 : i1 to i32
    %c0_i32_22 = arith.constant 0 : i32
    %38 = arith.cmpi ne, %37, %c0_i32_22 : i32
    scf.if %38 {
      %c0_37 = arith.constant 0 : index
      %c0_38 = arith.constant 0 : index
      %60 = vector.load %arg8[%c0_37, %c0_38] : memref<3x128xf32, #tpu.memory_space<vmem>>, vector<3x128xf32>
      %61 = arith.mulf %60, %60 : vector<3x128xf32>
      %cst_39 = arith.constant dense<0.000000e+00> : vector<128xf32>
      %62 = vector.multi_reduction <add>, %61, %cst_39 [0] : vector<3x128xf32> to vector<128xf32>
      %63 = vector.shape_cast %62 : vector<128xf32> to vector<1x128xf32>
      %64 = math.sqrt %63 : vector<1x128xf32>
      %cst_40 = arith.constant 1.000000e+00 : f32
      %65 = vector.broadcast %cst_40 : f32 to vector<1x128xf32>
      %66 = arith.subf %64, %65 : vector<1x128xf32>
      %67 = arith.mulf %66, %66 : vector<1x128xf32>
      %c32 = arith.constant 32 : index
      %c0_41 = arith.constant 0 : index
      %68 = vector.load %arg20[%c32, %c0_41] : memref<104x128xf32, #tpu.memory_space<vmem>>, vector<1x128xf32>
      %69 = arith.addf %68, %67 : vector<1x128xf32>
      %c32_42 = arith.constant 32 : index
      %c0_43 = arith.constant 0 : index
      %70 = vector.load %arg20[%c32_42, %c0_43] : memref<104x128xf32, #tpu.memory_space<vmem>>, vector<1x128xf32>
      tpu.vector_store %arg20[%c32_42, %c0_43], %69 {strides = array<i32>} : memref<104x128xf32, #tpu.memory_space<vmem>>, vector<1x128xf32>,
    } else {
    }
    %c1_i32_23 = arith.constant 1 : i32
    %39 = arith.cmpi slt, %1, %c1_i32_23 : i32
    %40 = arith.extui %39 : i1 to i32
    %c0_i32_24 = arith.constant 0 : i32
    %41 = arith.cmpi ne, %40, %c0_i32_24 : i32
    scf.if %41 {
      %c0_37 = arith.constant 0 : index
      %c0_38 = arith.constant 0 : index
      %60 = vector.load %arg9[%c0_37, %c0_38] : memref<3x128xf32, #tpu.memory_space<vmem>>, vector<3x128xf32>
      %61 = arith.mulf %60, %60 : vector<3x128xf32>
      %cst_39 = arith.constant dense<0.000000e+00> : vector<128xf32>
      %62 = vector.multi_reduction <add>, %61, %cst_39 [0] : vector<3x128xf32> to vector<128xf32>
      %63 = vector.shape_cast %62 : vector<128xf32> to vector<1x128xf32>
      %64 = math.sqrt %63 : vector<1x128xf32>
      %c40 = arith.constant 40 : index
      %c0_40 = arith.constant 0 : index
      %65 = vector.load %arg20[%c40, %c0_40] : memref<104x128xf32, #tpu.memory_space<vmem>>, vector<1x128xf32>
      %66 = arith.addf %65, %64 : vector<1x128xf32>
      %c40_41 = arith.constant 40 : index
      %c0_42 = arith.constant 0 : index
      %67 = vector.load %arg20[%c40_41, %c0_42] : memref<104x128xf32, #tpu.memory_space<vmem>>, vector<1x128xf32>
      tpu.vector_store %arg20[%c40_41, %c0_42], %66 {strides = array<i32>} : memref<104x128xf32, #tpu.memory_space<vmem>>, vector<1x128xf32>,
    } else {
    }
    %c1_i32_25 = arith.constant 1 : i32
    %42 = arith.cmpi slt, %1, %c1_i32_25 : i32
    %43 = arith.extui %42 : i1 to i32
    %c0_i32_26 = arith.constant 0 : i32
    %44 = arith.cmpi ne, %43, %c0_i32_26 : i32
    scf.if %44 {
      %c0_37 = arith.constant 0 : index
      %c0_38 = arith.constant 0 : index
      %60 = vector.load %arg10[%c0_37, %c0_38] : memref<3x128xf32, #tpu.memory_space<vmem>>, vector<3x128xf32>
      %61 = arith.mulf %60, %60 : vector<3x128xf32>
      %cst_39 = arith.constant dense<0.000000e+00> : vector<128xf32>
      %62 = vector.multi_reduction <add>, %61, %cst_39 [0] : vector<3x128xf32> to vector<128xf32>
      %63 = vector.shape_cast %62 : vector<128xf32> to vector<1x128xf32>
      %64 = math.sqrt %63 : vector<1x128xf32>
      %c48 = arith.constant 48 : index
      %c0_40 = arith.constant 0 : index
      %65 = vector.load %arg20[%c48, %c0_40] : memref<104x128xf32, #tpu.memory_space<vmem>>, vector<1x128xf32>
      %66 = arith.addf %65, %64 : vector<1x128xf32>
      %c48_41 = arith.constant 48 : index
      %c0_42 = arith.constant 0 : index
      %67 = vector.load %arg20[%c48_41, %c0_42] : memref<104x128xf32, #tpu.memory_space<vmem>>, vector<1x128xf32>
      tpu.vector_store %arg20[%c48_41, %c0_42], %66 {strides = array<i32>} : memref<104x128xf32, #tpu.memory_space<vmem>>, vector<1x128xf32>,
    } else {
    }
    %c1_i32_27 = arith.constant 1 : i32
    %45 = arith.cmpi slt, %1, %c1_i32_27 : i32
    %46 = arith.extui %45 : i1 to i32
    %c0_i32_28 = arith.constant 0 : i32
    %47 = arith.cmpi ne, %46, %c0_i32_28 : i32
    scf.if %47 {
      %c0_37 = arith.constant 0 : index
      %c0_38 = arith.constant 0 : index
      %60 = vector.load %arg11[%c0_37, %c0_38] : memref<3x128xf32, #tpu.memory_space<vmem>>, vector<3x128xf32>
      %61 = arith.mulf %60, %60 : vector<3x128xf32>
      %cst_39 = arith.constant dense<0.000000e+00> : vector<128xf32>
      %62 = vector.multi_reduction <add>, %61, %cst_39 [0] : vector<3x128xf32> to vector<128xf32>
      %63 = vector.shape_cast %62 : vector<128xf32> to vector<1x128xf32>
      %64 = math.sqrt %63 : vector<1x128xf32>
      %cst_40 = arith.constant 1.000000e+00 : f32
      %65 = vector.broadcast %cst_40 : f32 to vector<1x128xf32>
      %66 = arith.subf %64, %65 : vector<1x128xf32>
      %67 = arith.mulf %66, %66 : vector<1x128xf32>
      %c56 = arith.constant 56 : index
      %c0_41 = arith.constant 0 : index
      %68 = vector.load %arg20[%c56, %c0_41] : memref<104x128xf32, #tpu.memory_space<vmem>>, vector<1x128xf32>
      %69 = arith.addf %68, %67 : vector<1x128xf32>
      %c56_42 = arith.constant 56 : index
      %c0_43 = arith.constant 0 : index
      %70 = vector.load %arg20[%c56_42, %c0_43] : memref<104x128xf32, #tpu.memory_space<vmem>>, vector<1x128xf32>
      tpu.vector_store %arg20[%c56_42, %c0_43], %69 {strides = array<i32>} : memref<104x128xf32, #tpu.memory_space<vmem>>, vector<1x128xf32>,
    } else {
    }
    %c1_i32_29 = arith.constant 1 : i32
    %48 = arith.cmpi slt, %1, %c1_i32_29 : i32
    %49 = arith.extui %48 : i1 to i32
    %c0_i32_30 = arith.constant 0 : i32
    %50 = arith.cmpi ne, %49, %c0_i32_30 : i32
    scf.if %50 {
      %c0_37 = arith.constant 0 : index
      %c0_38 = arith.constant 0 : index
      %60 = vector.load %arg14[%c0_37, %c0_38] : memref<8x128xf32, #tpu.memory_space<vmem>>, vector<8x128xf32>
      %cst_39 = arith.constant 1.000000e-01 : f32
      %61 = vector.broadcast %cst_39 : f32 to vector<8x128xf32>
      %62 = arith.addf %61, %60 : vector<8x128xf32>
      %cst_40 = arith.constant 1.100000e+00 : f32
      %63 = vector.broadcast %cst_40 : f32 to vector<8x128xf32>
      %64 = arith.subf %63, %60 : vector<8x128xf32>
      %65 = arith.mulf %62, %64 : vector<8x128xf32>
      %66 = math.log %65 : vector<8x128xf32>
      %cst_41 = arith.constant 2.207270e+00 : f32
      %67 = vector.broadcast %cst_41 : f32 to vector<8x128xf32>
      %68 = arith.addf %66, %67 : vector<8x128xf32>
      %c72 = arith.constant 72 : index
      %c0_42 = arith.constant 0 : index
      %69 = vector.load %arg20[%c72, %c0_42] : memref<104x128xf32, #tpu.memory_space<vmem>>, vector<8x128xf32>
      %70 = arith.addf %69, %68 : vector<8x128xf32>
      %c72_43 = arith.constant 72 : index
      %c0_44 = arith.constant 0 : index
      %71 = vector.load %arg20[%c72_43, %c0_44] : memref<104x128xf32, #tpu.memory_space<vmem>>, vector<8x128xf32>
      tpu.vector_store %arg20[%c72_43, %c0_44], %70 {strides = array<i32>} : memref<104x128xf32, #tpu.memory_space<vmem>>, vector<8x128xf32>,
    } else {
    }
    %c1_i32_31 = arith.constant 1 : i32
    %51 = arith.cmpi slt, %1, %c1_i32_31 : i32
    %52 = arith.extui %51 : i1 to i32
    %c0_i32_32 = arith.constant 0 : i32
    %53 = arith.cmpi ne, %52, %c0_i32_32 : i32
    scf.if %53 {
      %c0_37 = arith.constant 0 : index
      %c0_38 = arith.constant 0 : index
      %60 = vector.load %arg15[%c0_37, %c0_38] : memref<8x128xf32, #tpu.memory_space<vmem>>, vector<8x128xf32>
      %cst_39 = arith.constant 5.000000e-04 : f32
      %61 = vector.broadcast %cst_39 : f32 to vector<8x128xf32>
      %62 = arith.subf %61, %60 : vector<8x128xf32>
      %cst_40 = arith.constant 0.000000e+00 : f32
      %63 = vector.broadcast %cst_40 : f32 to vector<8x128xf32>
      %64 = arith.maximumf %62, %63 : vector<8x128xf32>
      %c80 = arith.constant 80 : index
      %c0_41 = arith.constant 0 : index
      %65 = vector.load %arg20[%c80, %c0_41] : memref<104x128xf32, #tpu.memory_space<vmem>>, vector<8x128xf32>
      %66 = arith.addf %65, %64 : vector<8x128xf32>
      %c80_42 = arith.constant 80 : index
      %c0_43 = arith.constant 0 : index
      %67 = vector.load %arg20[%c80_42, %c0_43] : memref<104x128xf32, #tpu.memory_space<vmem>>, vector<8x128xf32>
      tpu.vector_store %arg20[%c80_42, %c0_43], %66 {strides = array<i32>} : memref<104x128xf32, #tpu.memory_space<vmem>>, vector<8x128xf32>,
    } else {
    }
    %c1_i32_33 = arith.constant 1 : i32
    %54 = arith.cmpi slt, %1, %c1_i32_33 : i32
    %55 = arith.extui %54 : i1 to i32
    %c0_i32_34 = arith.constant 0 : i32
    %56 = arith.cmpi ne, %55, %c0_i32_34 : i32
    scf.if %56 {
      %c0_37 = arith.constant 0 : index
      %c0_38 = arith.constant 0 : index
      %60 = vector.load %arg17[%c0_37, %c0_38] : memref<3x128xf32, #tpu.memory_space<vmem>>, vector<3x128xf32>
      %c0_39 = arith.constant 0 : index
      %c0_40 = arith.constant 0 : index
      %61 = vector.load %arg16[%c0_39, %c0_40] : memref<3x128xf32, #tpu.memory_space<vmem>>, vector<3x128xf32>
      %62 = arith.subf %60, %61 : vector<3x128xf32>
      %c0_41 = arith.constant 0 : index
      %c0_42 = arith.constant 0 : index
      %63 = vector.load %arg18[%c0_41, %c0_42] : memref<1x128xf32, #tpu.memory_space<vmem>>, vector<1x128xf32>
      %64 = arith.mulf %62, %62 : vector<3x128xf32>
      %65 = vector.broadcast %63 : vector<1x128xf32> to vector<3x128xf32>
      %66 = arith.mulf %64, %65 : vector<3x128xf32>
      %c88 = arith.constant 88 : index
      %c0_43 = arith.constant 0 : index
      %67 = vector.load %arg20[%c88, %c0_43] : memref<104x128xf32, #tpu.memory_space<vmem>>, vector<3x128xf32>
      %68 = arith.addf %67, %66 : vector<3x128xf32>
      %c88_44 = arith.constant 88 : index
      %c0_45 = arith.constant 0 : index
      %69 = vector.load %arg20[%c88_44, %c0_45] : memref<104x128xf32, #tpu.memory_space<vmem>>, vector<3x128xf32>
      tpu.vector_store %arg20[%c88_44, %c0_45], %68 {strides = array<i32>} : memref<104x128xf32, #tpu.memory_space<vmem>>, vector<3x128xf32>,
      %c91 = arith.constant 91 : index
      %c0_46 = arith.constant 0 : index
      %70 = vector.load %arg20[%c91, %c0_46] : memref<104x128xf32, #tpu.memory_space<vmem>>, vector<1x128xf32>
      %71 = arith.addf %70, %63 : vector<1x128xf32>
      %c91_47 = arith.constant 91 : index
      %c0_48 = arith.constant 0 : index
      %72 = vector.load %arg20[%c91_47, %c0_48] : memref<104x128xf32, #tpu.memory_space<vmem>>, vector<1x128xf32>
      tpu.vector_store %arg20[%c91_47, %c0_48], %71 {strides = array<i32>} : memref<104x128xf32, #tpu.memory_space<vmem>>, vector<1x128xf32>,
    } else {
    }
    %c1_i32_35 = arith.constant 1 : i32
    %57 = arith.cmpi slt, %1, %c1_i32_35 : i32
    %58 = arith.extui %57 : i1 to i32
    %c0_i32_36 = arith.constant 0 : i32
    %59 = arith.cmpi ne, %58, %c0_i32_36 : i32
    scf.if %59 {
      %c0_37 = arith.constant 0 : index
      %c0_38 = arith.constant 0 : index
      %60 = vector.load %arg19[%c0_37, %c0_38] : memref<3x128xf32, #tpu.memory_space<vmem>>, vector<3x128xf32>
      %c0_39 = arith.constant 0 : index
      %c0_40 = arith.constant 0 : index
      %61 = vector.load %arg16[%c0_39, %c0_40] : memref<3x128xf32, #tpu.memory_space<vmem>>, vector<3x128xf32>
      %62 = arith.subf %60, %61 : vector<3x128xf32>
      %63 = arith.mulf %62, %62 : vector<3x128xf32>
      %c96 = arith.constant 96 : index
      %c0_41 = arith.constant 0 : index
      %64 = vector.load %arg20[%c96, %c0_41] : memref<104x128xf32, #tpu.memory_space<vmem>>, vector<3x128xf32>
      %65 = arith.addf %64, %63 : vector<3x128xf32>
      %c96_42 = arith.constant 96 : index
      %c0_43 = arith.constant 0 : index
      %66 = vector.load %arg20[%c96_42, %c0_43] : memref<104x128xf32, #tpu.memory_space<vmem>>, vector<3x128xf32>
      tpu.vector_store %arg20[%c96_42, %c0_43], %65 {strides = array<i32>} : memref<104x128xf32, #tpu.memory_space<vmem>>, vector<3x128xf32>,
    } else {
    }
    return
  }
  func.func @transform_0(%arg0: i32, %arg1: i32) -> (i32, i32) {
    %c3_i32 = arith.constant 3 : i32
    %0 = arith.muli %arg0, %c3_i32 : i32
    %1 = arith.addi %0, %arg1 : i32
    %c0_i32 = arith.constant 0 : i32
    %2 = arith.minsi %1, %c0_i32 : i32
    %c0_i32_0 = arith.constant 0 : i32
    %c0_i32_1 = arith.constant 0 : i32
    return %c0_i32_0, %2 : i32, i32
  }
  func.func @transform_1(%arg0: i32, %arg1: i32) -> (i32, i32) {
    %c3_i32 = arith.constant 3 : i32
    %0 = arith.muli %arg0, %c3_i32 : i32
    %1 = arith.addi %0, %arg1 : i32
    %c0_i32 = arith.constant 0 : i32
    %2 = arith.minsi %1, %c0_i32 : i32
    %c0_i32_0 = arith.constant 0 : i32
    %c0_i32_1 = arith.constant 0 : i32
    return %c0_i32_0, %2 : i32, i32
  }
  func.func @transform_2(%arg0: i32, %arg1: i32) -> (i32, i32) {
    %c3_i32 = arith.constant 3 : i32
    %0 = arith.muli %arg0, %c3_i32 : i32
    %1 = arith.addi %0, %arg1 : i32
    %c0_i32 = arith.constant 0 : i32
    %2 = arith.minsi %1, %c0_i32 : i32
    %c0_i32_0 = arith.constant 0 : i32
    %c0_i32_1 = arith.constant 0 : i32
    return %c0_i32_0, %2 : i32, i32
  }
  func.func @transform_3(%arg0: i32, %arg1: i32) -> (i32, i32) {
    %c3_i32 = arith.constant 3 : i32
    %0 = arith.muli %arg0, %c3_i32 : i32
    %1 = arith.addi %0, %arg1 : i32
    %c0_i32 = arith.constant 0 : i32
    %c0_i32_0 = arith.constant 0 : i32
    return %c0_i32, %1 : i32, i32
  }
  func.func @transform_4(%arg0: i32, %arg1: i32) -> (i32, i32) {
    %c3_i32 = arith.constant 3 : i32
    %0 = arith.muli %arg0, %c3_i32 : i32
    %1 = arith.addi %0, %arg1 : i32
    %c0_i32 = arith.constant 0 : i32
    %c0_i32_0 = arith.constant 0 : i32
    return %c0_i32, %1 : i32, i32
  }
  func.func @transform_5(%arg0: i32, %arg1: i32) -> (i32, i32) {
    %c3_i32 = arith.constant 3 : i32
    %0 = arith.muli %arg0, %c3_i32 : i32
    %1 = arith.addi %0, %arg1 : i32
    %c0_i32 = arith.constant 0 : i32
    %2 = arith.minsi %1, %c0_i32 : i32
    %c0_i32_0 = arith.constant 0 : i32
    %c0_i32_1 = arith.constant 0 : i32
    return %c0_i32_0, %2 : i32, i32
  }
  func.func @transform_6(%arg0: i32, %arg1: i32) -> (i32, i32) {
    %c3_i32 = arith.constant 3 : i32
    %0 = arith.muli %arg0, %c3_i32 : i32
    %1 = arith.addi %0, %arg1 : i32
    %c0_i32 = arith.constant 0 : i32
    %2 = arith.minsi %1, %c0_i32 : i32
    %c0_i32_0 = arith.constant 0 : i32
    %c0_i32_1 = arith.constant 0 : i32
    return %c0_i32_0, %2 : i32, i32
  }
  func.func @transform_7(%arg0: i32, %arg1: i32) -> (i32, i32) {
    %c3_i32 = arith.constant 3 : i32
    %0 = arith.muli %arg0, %c3_i32 : i32
    %1 = arith.addi %0, %arg1 : i32
    %c0_i32 = arith.constant 0 : i32
    %2 = arith.minsi %1, %c0_i32 : i32
    %c0_i32_0 = arith.constant 0 : i32
    %c0_i32_1 = arith.constant 0 : i32
    return %c0_i32_0, %2 : i32, i32
  }
  func.func @transform_8(%arg0: i32, %arg1: i32) -> (i32, i32) {
    %c3_i32 = arith.constant 3 : i32
    %0 = arith.muli %arg0, %c3_i32 : i32
    %1 = arith.addi %0, %arg1 : i32
    %c0_i32 = arith.constant 0 : i32
    %2 = arith.minsi %1, %c0_i32 : i32
    %c0_i32_0 = arith.constant 0 : i32
    %c0_i32_1 = arith.constant 0 : i32
    return %c0_i32_0, %2 : i32, i32
  }
  func.func @transform_9(%arg0: i32, %arg1: i32) -> (i32, i32) {
    %c3_i32 = arith.constant 3 : i32
    %0 = arith.muli %arg0, %c3_i32 : i32
    %1 = arith.addi %0, %arg1 : i32
    %c0_i32 = arith.constant 0 : i32
    %2 = arith.minsi %1, %c0_i32 : i32
    %c0_i32_0 = arith.constant 0 : i32
    %c0_i32_1 = arith.constant 0 : i32
    return %c0_i32_0, %2 : i32, i32
  }
  func.func @transform_10(%arg0: i32, %arg1: i32) -> (i32, i32) {
    %c3_i32 = arith.constant 3 : i32
    %0 = arith.muli %arg0, %c3_i32 : i32
    %1 = arith.addi %0, %arg1 : i32
    %c0_i32 = arith.constant 0 : i32
    %c0_i32_0 = arith.constant 0 : i32
    return %c0_i32, %1 : i32, i32
  }
  func.func @transform_11(%arg0: i32, %arg1: i32) -> (i32, i32) {
    %c3_i32 = arith.constant 3 : i32
    %0 = arith.muli %arg0, %c3_i32 : i32
    %1 = arith.addi %0, %arg1 : i32
    %c0_i32 = arith.constant 0 : i32
    %c0_i32_0 = arith.constant 0 : i32
    return %c0_i32, %1 : i32, i32
  }
  func.func @transform_12(%arg0: i32, %arg1: i32) -> (i32, i32) {
    %c3_i32 = arith.constant 3 : i32
    %0 = arith.muli %arg0, %c3_i32 : i32
    %1 = arith.addi %0, %arg1 : i32
    %c0_i32 = arith.constant 0 : i32
    %2 = arith.minsi %1, %c0_i32 : i32
    %c0_i32_0 = arith.constant 0 : i32
    %c0_i32_1 = arith.constant 0 : i32
    return %c0_i32_0, %2 : i32, i32
  }
  func.func @transform_13(%arg0: i32, %arg1: i32) -> (i32, i32) {
    %c3_i32 = arith.constant 3 : i32
    %0 = arith.muli %arg0, %c3_i32 : i32
    %1 = arith.addi %0, %arg1 : i32
    %c0_i32 = arith.constant 0 : i32
    %2 = arith.minsi %1, %c0_i32 : i32
    %c0_i32_0 = arith.constant 0 : i32
    %c0_i32_1 = arith.constant 0 : i32
    return %c0_i32_0, %2 : i32, i32
  }
  func.func @transform_14(%arg0: i32, %arg1: i32) -> (i32, i32) {
    %c3_i32 = arith.constant 3 : i32
    %0 = arith.muli %arg0, %c3_i32 : i32
    %1 = arith.addi %0, %arg1 : i32
    %c0_i32 = arith.constant 0 : i32
    %2 = arith.minsi %1, %c0_i32 : i32
    %c0_i32_0 = arith.constant 0 : i32
    %c0_i32_1 = arith.constant 0 : i32
    return %c0_i32_0, %2 : i32, i32
  }
  func.func @transform_15(%arg0: i32, %arg1: i32) -> (i32, i32) {
    %c3_i32 = arith.constant 3 : i32
    %0 = arith.muli %arg0, %c3_i32 : i32
    %1 = arith.addi %0, %arg1 : i32
    %c0_i32 = arith.constant 0 : i32
    %2 = arith.minsi %1, %c0_i32 : i32
    %c0_i32_0 = arith.constant 0 : i32
    %c0_i32_1 = arith.constant 0 : i32
    return %c0_i32_0, %2 : i32, i32
  }
  func.func @transform_16(%arg0: i32, %arg1: i32) -> (i32, i32) {
    %c3_i32 = arith.constant 3 : i32
    %0 = arith.muli %arg0, %c3_i32 : i32
    %1 = arith.addi %0, %arg1 : i32
    %c0_i32 = arith.constant 0 : i32
    %2 = arith.minsi %1, %c0_i32 : i32
    %c0_i32_0 = arith.constant 0 : i32
    %c0_i32_1 = arith.constant 0 : i32
    return %c0_i32_0, %2 : i32, i32
  }
  func.func @transform_17(%arg0: i32, %arg1: i32) -> (i32, i32) {
    %c3_i32 = arith.constant 3 : i32
    %0 = arith.muli %arg0, %c3_i32 : i32
    %1 = arith.addi %0, %arg1 : i32
    %c0_i32 = arith.constant 0 : i32
    %2 = arith.minsi %1, %c0_i32 : i32
    %c0_i32_0 = arith.constant 0 : i32
    %c0_i32_1 = arith.constant 0 : i32
    return %c0_i32_0, %2 : i32, i32
  }
  func.func @transform_18(%arg0: i32, %arg1: i32) -> (i32, i32) {
    %c0_i32 = arith.constant 0 : i32
    %c0_i32_0 = arith.constant 0 : i32
    return %arg0, %c0_i32 : i32, i32
  }
}

</mosaic_0001>

<llo_original>
// kernel: tpu_custom_call.1
$region0: #{tpu_custom_call.1}
  #allocation0 [shape = 'u32[]', space=smem, size = 0x4, offset = 0x4, fixed_abs, tag = 'smem constant byte address 0x4 - core index']
  #allocation1 [shape = 'u32[144,128]{1,0:T(1,128)}', space=vmem, size = 0x12000, scoped, tag = 'internal scratch']
  %s0 = inlined_call_operand.hbm [shape: f32[3,128], index: 0, kind: input, shape index: {}]
  %s1 = inlined_call_operand.hbm [shape: f32[3,128], index: 1, kind: input, shape index: {}]
  %s2 = inlined_call_operand.hbm [shape: f32[3,128], index: 2, kind: input, shape index: {}]
  %s3 = inlined_call_operand.hbm [shape: f32[8,384], index: 3, kind: input, shape index: {}]
  %s4 = inlined_call_operand.hbm [shape: f32[8,384], index: 4, kind: input, shape index: {}]
  %s5 = inlined_call_operand.hbm [shape: f32[3,128], index: 5, kind: input, shape index: {}]
  %s6 = inlined_call_operand.hbm [shape: f32[3,128], index: 6, kind: input, shape index: {}]
  %s7 = inlined_call_operand.hbm [shape: f32[3,128], index: 7, kind: input, shape index: {}]
  %s8 = inlined_call_operand.hbm [shape: f32[3,128], index: 8, kind: input, shape index: {}]
  %s9 = inlined_call_operand.hbm [shape: f32[3,128], index: 9, kind: input, shape index: {}]
  %s10 = inlined_call_operand.hbm [shape: f32[8,384], index: 10, kind: input, shape index: {}]
  %s11 = inlined_call_operand.hbm [shape: f32[8,384], index: 11, kind: input, shape index: {}]
  %s12 = inlined_call_operand.vmem [shape: f32[8,128], index: 12, kind: input, shape index: {}]
  %s13 = inlined_call_operand.vmem [shape: f32[8,128], index: 13, kind: input, shape index: {}]
  %s14 = inlined_call_operand.vmem [shape: f32[3,128], index: 14, kind: input, shape index: {}]
  %s15 = inlined_call_operand.vmem [shape: f32[3,128], index: 15, kind: input, shape index: {}]
  %s16 = inlined_call_operand.vmem [shape: f32[1,128], index: 16, kind: input, shape index: {}]
  %s17 = inlined_call_operand.vmem [shape: f32[3,128], index: 17, kind: input, shape index: {}]
  %s18 = inlined_call_operand.hbm [shape: f32[104,128], index: 18, kind: output, shape index: {}]
  %s19 = sld [smem:[#allocation0]]
  $region161: #{tpu_custom_call.1} parent=0
    _
  %s21 = ssub.s32 1, %s19
  %s22 = scalar_select 0, %s21, %s19
  $region1: #{tpu_custom_call.1} parent=0
    #allocation2 [shape = 'u8[4096]{0}', space=vmem, size = 0x1000, scoped, tag = 'input window, operand 0']
    #allocation3 [shape = 's32[2]{0}', space=sflag, size = 0x8, scoped, tag = 'scoped memory for tpu_custom_call.1']
    #allocation4 [shape = 's32[2]{0}', space=sflag, size = 0x8, scoped, tag = 'scoped memory for tpu_custom_call.1']
    #allocation5 [shape = 'u8[4096]{0}', space=vmem, size = 0x1000, scoped, tag = 'input window, operand 1']
    #allocation6 [shape = 's32[2]{0}', space=sflag, size = 0x8, scoped, tag = 'scoped memory for tpu_custom_call.1']
    #allocation7 [shape = 'u8[4096]{0}', space=vmem, size = 0x1000, scoped, tag = 'input window, operand 2']
    #allocation8 [shape = 'u8[8192]{0}', space=vmem, size = 0x2000, scoped, tag = 'input window, operand 3']
    #allocation9 [shape = 's32[2]{0}', space=sflag, size = 0x8, scoped, tag = 'scoped memory for tpu_custom_call.1']
    #allocation10 [shape = 'u8[8192]{0}', space=vmem, size = 0x2000, scoped, tag = 'input window, operand 4']
    #allocation11 [shape = 'u8[4096]{0}', space=vmem, size = 0x1000, scoped, tag = 'input window, operand 5']
    #allocation12 [shape = 's32[2]{0}', space=sflag, size = 0x8, scoped, tag = 'scoped memory for tpu_custom_call.1']
    #allocation13 [shape = 'u8[4096]{0}', space=vmem, size = 0x1000, scoped, tag = 'input window, operand 6']
    #allocation14 [shape = 'u8[4096]{0}', space=vmem, size = 0x1000, scoped, tag = 'input window, operand 7']
    #allocation15 [shape = 's32[2]{0}', space=sflag, size = 0x8, scoped, tag = 'scoped memory for tpu_custom_call.1']
    #allocation16 [shape = 'u8[4096]{0}', space=vmem, size = 0x1000, scoped, tag = 'input window, operand 8']
    #allocation17 [shape = 'u8[4096]{0}', space=vmem, size = 0x1000, scoped, tag = 'input window, operand 9']
    #allocation18 [shape = 's32[2]{0}', space=sflag, size = 0x8, scoped, tag = 'scoped memory for tpu_custom_call.1']
    #allocation19 [shape = 'u8[8192]{0}', space=vmem, size = 0x2000, scoped, tag = 'input window, operand 10']
    #allocation20 [shape = 'u8[8192]{0}', space=vmem, size = 0x2000, scoped, tag = 'input window, operand 11']
    #allocation21 [shape = 's32[2]{0}', space=sflag, size = 0x8, scoped, tag = 'scoped memory for tpu_custom_call.1']
    #allocation22 [shape = 'u8[53248]{0}', space=vmem, size = 0xd000, scoped, tag = 'output window, operand 0, single buffered']
    %23 = vsyncpa [#allocation3], 0
    %s24 = scalar_lea.sflag [#allocation3], 1
    %25 = vsyncpa %s24, 0
    %26 = vsyncpa [#allocation6], 0
    %s27 = scalar_lea.sflag [#allocation6], 1
    %28 = vsyncpa %s27, 0
    %29 = vsyncpa [#allocation9], 0
    %s30 = scalar_lea.sflag [#allocation9], 1
    %31 = vsyncpa %s30, 0
    %32 = vsyncpa [#allocation12], 0
    %s33 = scalar_lea.sflag [#allocation12], 1
    %34 = vsyncpa %s33, 0
    %35 = vsyncpa [#allocation15], 0
    %s36 = scalar_lea.sflag [#allocation15], 1
    %37 = vsyncpa %s36, 0
    %38 = vsyncpa [#allocation18], 0
    %s39 = scalar_lea.sflag [#allocation18], 1
    %40 = vsyncpa %s39, 0
    %41 = vsyncpa [#allocation21], 0
    %s42 = scalar_lea.sflag [#allocation21], 1
    %43 = vsyncpa %s42, 0
    %44 = vsyncpa [#allocation4], 0
    loop: start=0, step=1, limit=5
    $region2: #{tpu_custom_call.1} parent=1 // loop_pre_header
      _
    $region3: #{tpu_custom_call.1} parent=1 // loop_header
      %s46 = sphi 0, %s50
      %p47 = scmp.ge.s32.totalorder %s46, 5
      %s53 = sphi 0, %s65
      %s54 = sphi 0, %s61
      %s55 = sphi 0, %s53
      %s56 = sphi 0, %s54
      %s57 = sphi 0, %s55
      %s58 = sphi 0, %s56
      %s76 = sphi 0, %s78
      %s79 = sphi 0, %s76
      %s80 = sphi 0, %s79
      %s96 = sphi 0, %s80
      %s110 = sphi 0, %s112
      %s113 = sphi 0, %s110
      %s114 = sphi 0, %s113
      %s130 = sphi 0, %s114
      %s144 = sphi 0, %s146
      %s147 = sphi 0, %s144
      %s148 = sphi 0, %s147
      %s164 = sphi 0, %s148
      %s174 = sphi 0, %s176
      %s177 = sphi 0, %s174
      %s178 = sphi 0, %s177
      %s194 = sphi 0, %s178
      %s204 = sphi 0, %s206
      %s207 = sphi 0, %s204
      %s208 = sphi 0, %s207
      %s224 = sphi 0, %s208
      %s238 = sphi 0, %s240
      %s241 = sphi 0, %s238
      %s242 = sphi 0, %s241
      %s258 = sphi 0, %s242
      %s272 = sphi 0, %s274
      %s275 = sphi 0, %s272
      %s276 = sphi 0, %s275
      %s292 = sphi 0, %s276
      %s306 = sphi 0, %s308
      %s309 = sphi 0, %s306
      %s310 = sphi 0, %s309
      %s326 = sphi 0, %s310
      %s340 = sphi 0, %s342
      %s343 = sphi 0, %s340
      %s344 = sphi 0, %s343
      %s360 = sphi 0, %s344
      %s374 = sphi 0, %s376
      %s377 = sphi 0, %s374
      %s378 = sphi 0, %s377
      %s394 = sphi 0, %s378
      %s404 = sphi 0, %s406
      %s407 = sphi 0, %s404
      %s408 = sphi 0, %s407
      %s424 = sphi 0, %s408
      %s434 = sphi 0, %s436
      %s437 = sphi 0, %s434
      %s438 = sphi 0, %s437
      %s454 = sphi 0, %s438
      %s468 = sphi 0, %s470
      %s471 = sphi 0, %s468
      %s472 = sphi 0, %s471
      %s488 = sphi 0, %s472
      %s502 = sphi 0, %s504
      %s505 = sphi 0, %s502
      %s506 = sphi 0, %s505
      %s522 = sphi 0, %s506
      %s536 = sphi 0, %s538
      %s539 = sphi 0, %s536
      %s540 = sphi 0, %s539
      %s556 = sphi 0, %s540
      %s570 = sphi 0, %s572
      %s573 = sphi 0, %s570
      %s574 = sphi 0, %s573
      %s590 = sphi 0, %s574
      %s604 = sphi 0, %s606
      %s607 = sphi 0, %s604
      %s608 = sphi 0, %s607
      %s624 = sphi 0, %s608
      %s638 = sphi 0, %s640
      %s641 = sphi 0, %s638
      %s642 = sphi 0, %s641
      %s658 = sphi 0, %s642
      %s664 = sphi 0, %s666
      %s667 = sphi 0, %s664
      %s668 = sphi 0, %s667
      %s684 = sphi 0, %s668
    $region4: #{tpu_custom_call.1} parent=1 // loop_header_branch
      %49 = sbr.rel (%p47) target = $region8
    $region5: #{tpu_custom_call.1} parent=1 // loop_body
      %s51 = ssub.s32 %s46, 1
      %s52 = ssub.s32 %s46, 2
      %s59 = sadd.s32 1, %s54
      %p60 = scmp.ge.s32.totalorder %s59, 3
      %s61 = scalar_select %p60, 0, %s59
      %s62 = sadd.s32 1, %s53
      %s63 = scalar_select %p60, %s62, %s53
      %p64 = scmp.ge.s32.totalorder %s63, 1
      %s65 = scalar_select %p64, 0, %s63
      %s66 = smul.u32 %s53, 3
      %s67 = sadd.s32 %s66, %s54
      %p68 = scmp.lt.s32.totalorder %s67, 0
      %s69 = scalar_select %p68, %s67, 0
      %s70 = smul.u32 %s65, 3
      %s71 = sadd.s32 %s70, %s61
      %p72 = scmp.lt.s32.totalorder %s71, 0
      %s73 = scalar_select %p72, %s71, 0
      %s74 = ssub.s32 %s69, %s73
      %p75 = scmp.eq.s32.totalorder %s74, 0
      %s77 = sadd.s32 %s76, 1
      %s78 = scalar_select %p75, %s76, %s77
      %p81 = pneg %p75
      %p82 = scmp.eq.s32.totalorder %s46, 2
      %p83 = por %p81, %p82
      %p84 = scmp.ne.s32.totalorder %s76, %s79
      %p85 = scmp.eq.s32.totalorder %s46, 0
      %p86 = por %p84, %p85
      %p87 = scmp.ne.s32.totalorder %s76, %s79
      %p88 = scmp.eq.s32.totalorder %s51, 2
      %p89 = por %p87, %p88
      %p90 = scmp.ne.s32.totalorder %s79, %s80
      %p91 = scmp.eq.s32.totalorder %s51, 0
      %p92 = por %p90, %p91
      %p93 = scmp.ne.s32.totalorder %s79, %s80
      %p94 = scmp.eq.s32.totalorder %s52, 2
      %p95 = por %p93, %p94
      %p97 = scmp.ne.s32.totalorder %s80, %s96
      %p98 = scmp.eq.s32.totalorder %s52, 0
      %p99 = por %p97, %p98
      %s100 = smul.u32 %s53, 3
      %s101 = sadd.s32 %s100, %s54
      %p102 = scmp.lt.s32.totalorder %s101, 0
      %s103 = scalar_select %p102, %s101, 0
      %s104 = smul.u32 %s65, 3
      %s105 = sadd.s32 %s104, %s61
      %p106 = scmp.lt.s32.totalorder %s105, 0
      %s107 = scalar_select %p106, %s105, 0
      %s108 = ssub.s32 %s103, %s107
      %p109 = scmp.eq.s32.totalorder %s108, 0
      %s111 = sadd.s32 %s110, 1
      %s112 = scalar_select %p109, %s110, %s111
      %p115 = pneg %p109
      %p116 = scmp.eq.s32.totalorder %s46, 2
      %p117 = por %p115, %p116
      %p118 = scmp.ne.s32.totalorder %s110, %s113
      %p119 = scmp.eq.s32.totalorder %s46, 0
      %p120 = por %p118, %p119
      %p121 = scmp.ne.s32.totalorder %s110, %s113
      %p122 = scmp.eq.s32.totalorder %s51, 2
      %p123 = por %p121, %p122
      %p124 = scmp.ne.s32.totalorder %s113, %s114
      %p125 = scmp.eq.s32.totalorder %s51, 0
      %p126 = por %p124, %p125
      %p127 = scmp.ne.s32.totalorder %s113, %s114
      %p128 = scmp.eq.s32.totalorder %s52, 2
      %p129 = por %p127, %p128
      %p131 = scmp.ne.s32.totalorder %s114, %s130
      %p132 = scmp.eq.s32.totalorder %s52, 0
      %p133 = por %p131, %p132
      %s134 = smul.u32 %s53, 3
      %s135 = sadd.s32 %s134, %s54
      %p136 = scmp.lt.s32.totalorder %s135, 0
      %s137 = scalar_select %p136, %s135, 0
      %s138 = smul.u32 %s65, 3
      %s139 = sadd.s32 %s138, %s61
      %p140 = scmp.lt.s32.totalorder %s139, 0
      %s141 = scalar_select %p140, %s139, 0
      %s142 = ssub.s32 %s137, %s141
      %p143 = scmp.eq.s32.totalorder %s142, 0
      %s145 = sadd.s32 %s144, 1
      %s146 = scalar_select %p143, %s144, %s145
      %p149 = pneg %p143
      %p150 = scmp.eq.s32.totalorder %s46, 2
      %p151 = por %p149, %p150
      %p152 = scmp.ne.s32.totalorder %s144, %s147
      %p153 = scmp.eq.s32.totalorder %s46, 0
      %p154 = por %p152, %p153
      %p155 = scmp.ne.s32.totalorder %s144, %s147
      %p156 = scmp.eq.s32.totalorder %s51, 2
      %p157 = por %p155, %p156
      %p158 = scmp.ne.s32.totalorder %s147, %s148
      %p159 = scmp.eq.s32.totalorder %s51, 0
      %p160 = por %p158, %p159
      %p161 = scmp.ne.s32.totalorder %s147, %s148
      %p162 = scmp.eq.s32.totalorder %s52, 2
      %p163 = por %p161, %p162
      %p165 = scmp.ne.s32.totalorder %s148, %s164
      %p166 = scmp.eq.s32.totalorder %s52, 0
      %p167 = por %p165, %p166
      %s168 = smul.u32 %s53, 3
      %s169 = sadd.s32 %s168, %s54
      %s170 = smul.u32 %s65, 3
      %s171 = sadd.s32 %s170, %s61
      %s172 = ssub.s32 %s169, %s171
      %p173 = scmp.eq.s32.totalorder %s172, 0
      %s175 = sadd.s32 %s174, 1
      %s176 = scalar_select %p173, %s174, %s175
      %p179 = pneg %p173
      %p180 = scmp.eq.s32.totalorder %s46, 2
      %p181 = por %p179, %p180
      %p182 = scmp.ne.s32.totalorder %s174, %s177
      %p183 = scmp.eq.s32.totalorder %s46, 0
      %p184 = por %p182, %p183
      %p185 = scmp.ne.s32.totalorder %s174, %s177
      %p186 = scmp.eq.s32.totalorder %s51, 2
      %p187 = por %p185, %p186
      %p188 = scmp.ne.s32.totalorder %s177, %s178
      %p189 = scmp.eq.s32.totalorder %s51, 0
      %p190 = por %p188, %p189
      %p191 = scmp.ne.s32.totalorder %s177, %s178
      %p192 = scmp.eq.s32.totalorder %s52, 2
      %p193 = por %p191, %p192
      %p195 = scmp.ne.s32.totalorder %s178, %s194
      %p196 = scmp.eq.s32.totalorder %s52, 0
      %p197 = por %p195, %p196
      %s198 = smul.u32 %s53, 3
      %s199 = sadd.s32 %s198, %s54
      %s200 = smul.u32 %s65, 3
      %s201 = sadd.s32 %s200, %s61
      %s202 = ssub.s32 %s199, %s201
      %p203 = scmp.eq.s32.totalorder %s202, 0
      %s205 = sadd.s32 %s204, 1
      %s206 = scalar_select %p203, %s204, %s205
      %p209 = pneg %p203
      %p210 = scmp.eq.s32.totalorder %s46, 2
      %p211 = por %p209, %p210
      %p212 = scmp.ne.s32.totalorder %s204, %s207
      %p213 = scmp.eq.s32.totalorder %s46, 0
      %p214 = por %p212, %p213
      %p215 = scmp.ne.s32.totalorder %s204, %s207
      %p216 = scmp.eq.s32.totalorder %s51, 2
      %p217 = por %p215, %p216
      %p218 = scmp.ne.s32.totalorder %s207, %s208
      %p219 = scmp.eq.s32.totalorder %s51, 0
      %p220 = por %p218, %p219
      %p221 = scmp.ne.s32.totalorder %s207, %s208
      %p222 = scmp.eq.s32.totalorder %s52, 2
      %p223 = por %p221, %p222
      %p225 = scmp.ne.s32.totalorder %s208, %s224
      %p226 = scmp.eq.s32.totalorder %s52, 0
      %p227 = por %p225, %p226
      %s228 = smul.u32 %s53, 3
      %s229 = sadd.s32 %s228, %s54
      %p230 = scmp.lt.s32.totalorder %s229, 0
      %s231 = scalar_select %p230, %s229, 0
      %s232 = smul.u32 %s65, 3
      %s233 = sadd.s32 %s232, %s61
      %p234 = scmp.lt.s32.totalorder %s233, 0
      %s235 = scalar_select %p234, %s233, 0
      %s236 = ssub.s32 %s231, %s235
      %p237 = scmp.eq.s32.totalorder %s236, 0
      %s239 = sadd.s32 %s238, 1
      %s240 = scalar_select %p237, %s238, %s239
      %p243 = pneg %p237
      %p244 = scmp.eq.s32.totalorder %s46, 2
      %p245 = por %p243, %p244
      %p246 = scmp.ne.s32.totalorder %s238, %s241
      %p247 = scmp.eq.s32.totalorder %s46, 0
      %p248 = por %p246, %p247
      %p249 = scmp.ne.s32.totalorder %s238, %s241
      %p250 = scmp.eq.s32.totalorder %s51, 2
      %p251 = por %p249, %p250
      %p252 = scmp.ne.s32.totalorder %s241, %s242
      %p253 = scmp.eq.s32.totalorder %s51, 0
      %p254 = por %p252, %p253
      %p255 = scmp.ne.s32.totalorder %s241, %s242
      %p256 = scmp.eq.s32.totalorder %s52, 2
      %p257 = por %p255, %p256
      %p259 = scmp.ne.s32.totalorder %s242, %s258
      %p260 = scmp.eq.s32.totalorder %s52, 0
      %p261 = por %p259, %p260
      %s262 = smul.u32 %s53, 3
      %s263 = sadd.s32 %s262, %s54
      %p264 = scmp.lt.s32.totalorder %s263, 0
      %s265 = scalar_select %p264, %s263, 0
      %s266 = smul.u32 %s65, 3
      %s267 = sadd.s32 %s266, %s61
      %p268 = scmp.lt.s32.totalorder %s267, 0
      %s269 = scalar_select %p268, %s267, 0
      %s270 = ssub.s32 %s265, %s269
      %p271 = scmp.eq.s32.totalorder %s270, 0
      %s273 = sadd.s32 %s272, 1
      %s274 = scalar_select %p271, %s272, %s273
      %p277 = pneg %p271
      %p278 = scmp.eq.s32.totalorder %s46, 2
      %p279 = por %p277, %p278
      %p280 = scmp.ne.s32.totalorder %s272, %s275
      %p281 = scmp.eq.s32.totalorder %s46, 0
      %p282 = por %p280, %p281
      %p283 = scmp.ne.s32.totalorder %s272, %s275
      %p284 = scmp.eq.s32.totalorder %s51, 2
      %p285 = por %p283, %p284
      %p286 = scmp.ne.s32.totalorder %s275, %s276
      %p287 = scmp.eq.s32.totalorder %s51, 0
      %p288 = por %p286, %p287
      %p289 = scmp.ne.s32.totalorder %s275, %s276
      %p290 = scmp.eq.s32.totalorder %s52, 2
      %p291 = por %p289, %p290
      %p293 = scmp.ne.s32.totalorder %s276, %s292
      %p294 = scmp.eq.s32.totalorder %s52, 0
      %p295 = por %p293, %p294
      %s296 = smul.u32 %s53, 3
      %s297 = sadd.s32 %s296, %s54
      %p298 = scmp.lt.s32.totalorder %s297, 0
      %s299 = scalar_select %p298, %s297, 0
      %s300 = smul.u32 %s65, 3
      %s301 = sadd.s32 %s300, %s61
      %p302 = scmp.lt.s32.totalorder %s301, 0
      %s303 = scalar_select %p302, %s301, 0
      %s304 = ssub.s32 %s299, %s303
      %p305 = scmp.eq.s32.totalorder %s304, 0
      %s307 = sadd.s32 %s306, 1
      %s308 = scalar_select %p305, %s306, %s307
      %p311 = pneg %p305
      %p312 = scmp.eq.s32.totalorder %s46, 2
      %p313 = por %p311, %p312
      %p314 = scmp.ne.s32.totalorder %s306, %s309
      %p315 = scmp.eq.s32.totalorder %s46, 0
      %p316 = por %p314, %p315
      %p317 = scmp.ne.s32.totalorder %s306, %s309
      %p318 = scmp.eq.s32.totalorder %s51, 2
      %p319 = por %p317, %p318
      %p320 = scmp.ne.s32.totalorder %s309, %s310
      %p321 = scmp.eq.s32.totalorder %s51, 0
      %p322 = por %p320, %p321
      %p323 = scmp.ne.s32.totalorder %s309, %s310
      %p324 = scmp.eq.s32.totalorder %s52, 2
      %p325 = por %p323, %p324
      %p327 = scmp.ne.s32.totalorder %s310, %s326
      %p328 = scmp.eq.s32.totalorder %s52, 0
      %p329 = por %p327, %p328
      %s330 = smul.u32 %s53, 3
      %s331 = sadd.s32 %s330, %s54
      %p332 = scmp.lt.s32.totalorder %s331, 0
      %s333 = scalar_select %p332, %s331, 0
      %s334 = smul.u32 %s65, 3
      %s335 = sadd.s32 %s334, %s61
      %p336 = scmp.lt.s32.totalorder %s335, 0
      %s337 = scalar_select %p336, %s335, 0
      %s338 = ssub.s32 %s333, %s337
      %p339 = scmp.eq.s32.totalorder %s338, 0
      %s341 = sadd.s32 %s340, 1
      %s342 = scalar_select %p339, %s340, %s341
      %p345 = pneg %p339
      %p346 = scmp.eq.s32.totalorder %s46, 2
      %p347 = por %p345, %p346
      %p348 = scmp.ne.s32.totalorder %s340, %s343
      %p349 = scmp.eq.s32.totalorder %s46, 0
      %p350 = por %p348, %p349
      %p351 = scmp.ne.s32.totalorder %s340, %s343
      %p352 = scmp.eq.s32.totalorder %s51, 2
      %p353 = por %p351, %p352
      %p354 = scmp.ne.s32.totalorder %s343, %s344
      %p355 = scmp.eq.s32.totalorder %s51, 0
      %p356 = por %p354, %p355
      %p357 = scmp.ne.s32.totalorder %s343, %s344
      %p358 = scmp.eq.s32.totalorder %s52, 2
      %p359 = por %p357, %p358
      %p361 = scmp.ne.s32.totalorder %s344, %s360
      %p362 = scmp.eq.s32.totalorder %s52, 0
      %p363 = por %p361, %p362
      %s364 = smul.u32 %s53, 3
      %s365 = sadd.s32 %s364, %s54
      %p366 = scmp.lt.s32.totalorder %s365, 0
      %s367 = scalar_select %p366, %s365, 0
      %s368 = smul.u32 %s65, 3
      %s369 = sadd.s32 %s368, %s61
      %p370 = scmp.lt.s32.totalorder %s369, 0
      %s371 = scalar_select %p370, %s369, 0
      %s372 = ssub.s32 %s367, %s371
      %p373 = scmp.eq.s32.totalorder %s372, 0
      %s375 = sadd.s32 %s374, 1
      %s376 = scalar_select %p373, %s374, %s375
      %p379 = pneg %p373
      %p380 = scmp.eq.s32.totalorder %s46, 2
      %p381 = por %p379, %p380
      %p382 = scmp.ne.s32.totalorder %s374, %s377
      %p383 = scmp.eq.s32.totalorder %s46, 0
      %p384 = por %p382, %p383
      %p385 = scmp.ne.s32.totalorder %s374, %s377
      %p386 = scmp.eq.s32.totalorder %s51, 2
      %p387 = por %p385, %p386
      %p388 = scmp.ne.s32.totalorder %s377, %s378
      %p389 = scmp.eq.s32.totalorder %s51, 0
      %p390 = por %p388, %p389
      %p391 = scmp.ne.s32.totalorder %s377, %s378
      %p392 = scmp.eq.s32.totalorder %s52, 2
      %p393 = por %p391, %p392
      %p395 = scmp.ne.s32.totalorder %s378, %s394
      %p396 = scmp.eq.s32.totalorder %s52, 0
      %p397 = por %p395, %p396
      %s398 = smul.u32 %s53, 3
      %s399 = sadd.s32 %s398, %s54
      %s400 = smul.u32 %s65, 3
      %s401 = sadd.s32 %s400, %s61
      %s402 = ssub.s32 %s399, %s401
      %p403 = scmp.eq.s32.totalorder %s402, 0
      %s405 = sadd.s32 %s404, 1
      %s406 = scalar_select %p403, %s404, %s405
      %p409 = pneg %p403
      %p410 = scmp.eq.s32.totalorder %s46, 2
      %p411 = por %p409, %p410
      %p412 = scmp.ne.s32.totalorder %s404, %s407
      %p413 = scmp.eq.s32.totalorder %s46, 0
      %p414 = por %p412, %p413
      %p415 = scmp.ne.s32.totalorder %s404, %s407
      %p416 = scmp.eq.s32.totalorder %s51, 2
      %p417 = por %p415, %p416
      %p418 = scmp.ne.s32.totalorder %s407, %s408
      %p419 = scmp.eq.s32.totalorder %s51, 0
      %p420 = por %p418, %p419
      %p421 = scmp.ne.s32.totalorder %s407, %s408
      %p422 = scmp.eq.s32.totalorder %s52, 2
      %p423 = por %p421, %p422
      %p425 = scmp.ne.s32.totalorder %s408, %s424
      %p426 = scmp.eq.s32.totalorder %s52, 0
      %p427 = por %p425, %p426
      %s428 = smul.u32 %s53, 3
      %s429 = sadd.s32 %s428, %s54
      %s430 = smul.u32 %s65, 3
      %s431 = sadd.s32 %s430, %s61
      %s432 = ssub.s32 %s429, %s431
      %p433 = scmp.eq.s32.totalorder %s432, 0
      %s435 = sadd.s32 %s434, 1
      %s436 = scalar_select %p433, %s434, %s435
      %p439 = pneg %p433
      %p440 = scmp.eq.s32.totalorder %s46, 2
      %p441 = por %p439, %p440
      %p442 = scmp.ne.s32.totalorder %s434, %s437
      %p443 = scmp.eq.s32.totalorder %s46, 0
      %p444 = por %p442, %p443
      %p445 = scmp.ne.s32.totalorder %s434, %s437
      %p446 = scmp.eq.s32.totalorder %s51, 2
      %p447 = por %p445, %p446
      %p448 = scmp.ne.s32.totalorder %s437, %s438
      %p449 = scmp.eq.s32.totalorder %s51, 0
      %p450 = por %p448, %p449
      %p451 = scmp.ne.s32.totalorder %s437, %s438
      %p452 = scmp.eq.s32.totalorder %s52, 2
      %p453 = por %p451, %p452
      %p455 = scmp.ne.s32.totalorder %s438, %s454
      %p456 = scmp.eq.s32.totalorder %s52, 0
      %p457 = por %p455, %p456
      %s458 = smul.u32 %s53, 3
      %s459 = sadd.s32 %s458, %s54
      %p460 = scmp.lt.s32.totalorder %s459, 0
      %s461 = scalar_select %p460, %s459, 0
      %s462 = smul.u32 %s65, 3
      %s463 = sadd.s32 %s462, %s61
      %p464 = scmp.lt.s32.totalorder %s463, 0
      %s465 = scalar_select %p464, %s463, 0
      %s466 = ssub.s32 %s461, %s465
      %p467 = scmp.eq.s32.totalorder %s466, 0
      %s469 = sadd.s32 %s468, 1
      %s470 = scalar_select %p467, %s468, %s469
      %p473 = pneg %p467
      %p474 = scmp.eq.s32.totalorder %s46, 2
      %p475 = por %p473, %p474
      %p476 = scmp.ne.s32.totalorder %s468, %s471
      %p477 = scmp.eq.s32.totalorder %s46, 0
      %p478 = por %p476, %p477
      %p479 = scmp.ne.s32.totalorder %s468, %s471
      %p480 = scmp.eq.s32.totalorder %s51, 2
      %p481 = por %p479, %p480
      %p482 = scmp.ne.s32.totalorder %s471, %s472
      %p483 = scmp.eq.s32.totalorder %s51, 0
      %p484 = por %p482, %p483
      %p485 = scmp.ne.s32.totalorder %s471, %s472
      %p486 = scmp.eq.s32.totalorder %s52, 2
      %p487 = por %p485, %p486
      %p489 = scmp.ne.s32.totalorder %s472, %s488
      %p490 = scmp.eq.s32.totalorder %s52, 0
      %p491 = por %p489, %p490
      %s492 = smul.u32 %s53, 3
      %s493 = sadd.s32 %s492, %s54
      %p494 = scmp.lt.s32.totalorder %s493, 0
      %s495 = scalar_select %p494, %s493, 0
      %s496 = smul.u32 %s65, 3
      %s497 = sadd.s32 %s496, %s61
      %p498 = scmp.lt.s32.totalorder %s497, 0
      %s499 = scalar_select %p498, %s497, 0
      %s500 = ssub.s32 %s495, %s499
      %p501 = scmp.eq.s32.totalorder %s500, 0
      %s503 = sadd.s32 %s502, 1
      %s504 = scalar_select %p501, %s502, %s503
      %p507 = pneg %p501
      %p508 = scmp.eq.s32.totalorder %s46, 2
      %p509 = por %p507, %p508
      %p510 = scmp.ne.s32.totalorder %s502, %s505
      %p511 = scmp.eq.s32.totalorder %s46, 0
      %p512 = por %p510, %p511
      %p513 = scmp.ne.s32.totalorder %s502, %s505
      %p514 = scmp.eq.s32.totalorder %s51, 2
      %p515 = por %p513, %p514
      %p516 = scmp.ne.s32.totalorder %s505, %s506
      %p517 = scmp.eq.s32.totalorder %s51, 0
      %p518 = por %p516, %p517
      %p519 = scmp.ne.s32.totalorder %s505, %s506
      %p520 = scmp.eq.s32.totalorder %s52, 2
      %p521 = por %p519, %p520
      %p523 = scmp.ne.s32.totalorder %s506, %s522
      %p524 = scmp.eq.s32.totalorder %s52, 0
      %p525 = por %p523, %p524
      %s526 = smul.u32 %s53, 3
      %s527 = sadd.s32 %s526, %s54
      %p528 = scmp.lt.s32.totalorder %s527, 0
      %s529 = scalar_select %p528, %s527, 0
      %s530 = smul.u32 %s65, 3
      %s531 = sadd.s32 %s530, %s61
      %p532 = scmp.lt.s32.totalorder %s531, 0
      %s533 = scalar_select %p532, %s531, 0
      %s534 = ssub.s32 %s529, %s533
      %p535 = scmp.eq.s32.totalorder %s534, 0
      %s537 = sadd.s32 %s536, 1
      %s538 = scalar_select %p535, %s536, %s537
      %p541 = pneg %p535
      %p542 = scmp.eq.s32.totalorder %s46, 2
      %p543 = por %p541, %p542
      %p544 = scmp.ne.s32.totalorder %s536, %s539
      %p545 = scmp.eq.s32.totalorder %s46, 0
      %p546 = por %p544, %p545
      %p547 = scmp.ne.s32.totalorder %s536, %s539
      %p548 = scmp.eq.s32.totalorder %s51, 2
      %p549 = por %p547, %p548
      %p550 = scmp.ne.s32.totalorder %s539, %s540
      %p551 = scmp.eq.s32.totalorder %s51, 0
      %p552 = por %p550, %p551
      %p553 = scmp.ne.s32.totalorder %s539, %s540
      %p554 = scmp.eq.s32.totalorder %s52, 2
      %p555 = por %p553, %p554
      %p557 = scmp.ne.s32.totalorder %s540, %s556
      %p558 = scmp.eq.s32.totalorder %s52, 0
      %p559 = por %p557, %p558
      %s560 = smul.u32 %s53, 3
      %s561 = sadd.s32 %s560, %s54
      %p562 = scmp.lt.s32.totalorder %s561, 0
      %s563 = scalar_select %p562, %s561, 0
      %s564 = smul.u32 %s65, 3
      %s565 = sadd.s32 %s564, %s61
      %p566 = scmp.lt.s32.totalorder %s565, 0
      %s567 = scalar_select %p566, %s565, 0
      %s568 = ssub.s32 %s563, %s567
      %p569 = scmp.eq.s32.totalorder %s568, 0
      %s571 = sadd.s32 %s570, 1
      %s572 = scalar_select %p569, %s570, %s571
      %p575 = pneg %p569
      %p576 = scmp.eq.s32.totalorder %s46, 2
      %p577 = por %p575, %p576
      %p578 = scmp.ne.s32.totalorder %s570, %s573
      %p579 = scmp.eq.s32.totalorder %s46, 0
      %p580 = por %p578, %p579
      %p581 = scmp.ne.s32.totalorder %s570, %s573
      %p582 = scmp.eq.s32.totalorder %s51, 2
      %p583 = por %p581, %p582
      %p584 = scmp.ne.s32.totalorder %s573, %s574
      %p585 = scmp.eq.s32.totalorder %s51, 0
      %p586 = por %p584, %p585
      %p587 = scmp.ne.s32.totalorder %s573, %s574
      %p588 = scmp.eq.s32.totalorder %s52, 2
      %p589 = por %p587, %p588
      %p591 = scmp.ne.s32.totalorder %s574, %s590
      %p592 = scmp.eq.s32.totalorder %s52, 0
      %p593 = por %p591, %p592
      %s594 = smul.u32 %s53, 3
      %s595 = sadd.s32 %s594, %s54
      %p596 = scmp.lt.s32.totalorder %s595, 0
      %s597 = scalar_select %p596, %s595, 0
      %s598 = smul.u32 %s65, 3
      %s599 = sadd.s32 %s598, %s61
      %p600 = scmp.lt.s32.totalorder %s599, 0
      %s601 = scalar_select %p600, %s599, 0
      %s602 = ssub.s32 %s597, %s601
      %p603 = scmp.eq.s32.totalorder %s602, 0
      %s605 = sadd.s32 %s604, 1
      %s606 = scalar_select %p603, %s604, %s605
      %p609 = pneg %p603
      %p610 = scmp.eq.s32.totalorder %s46, 2
      %p611 = por %p609, %p610
      %p612 = scmp.ne.s32.totalorder %s604, %s607
      %p613 = scmp.eq.s32.totalorder %s46, 0
      %p614 = por %p612, %p613
      %p615 = scmp.ne.s32.totalorder %s604, %s607
      %p616 = scmp.eq.s32.totalorder %s51, 2
      %p617 = por %p615, %p616
      %p618 = scmp.ne.s32.totalorder %s607, %s608
      %p619 = scmp.eq.s32.totalorder %s51, 0
      %p620 = por %p618, %p619
      %p621 = scmp.ne.s32.totalorder %s607, %s608
      %p622 = scmp.eq.s32.totalorder %s52, 2
      %p623 = por %p621, %p622
      %p625 = scmp.ne.s32.totalorder %s608, %s624
      %p626 = scmp.eq.s32.totalorder %s52, 0
      %p627 = por %p625, %p626
      %s628 = smul.u32 %s53, 3
      %s629 = sadd.s32 %s628, %s54
      %p630 = scmp.lt.s32.totalorder %s629, 0
      %s631 = scalar_select %p630, %s629, 0
      %s632 = smul.u32 %s65, 3
      %s633 = sadd.s32 %s632, %s61
      %p634 = scmp.lt.s32.totalorder %s633, 0
      %s635 = scalar_select %p634, %s633, 0
      %s636 = ssub.s32 %s631, %s635
      %p637 = scmp.eq.s32.totalorder %s636, 0
      %s639 = sadd.s32 %s638, 1
      %s640 = scalar_select %p637, %s638, %s639
      %p643 = pneg %p637
      %p644 = scmp.eq.s32.totalorder %s46, 2
      %p645 = por %p643, %p644
      %p646 = scmp.ne.s32.totalorder %s638, %s641
      %p647 = scmp.eq.s32.totalorder %s46, 0
      %p648 = por %p646, %p647
      %p649 = scmp.ne.s32.totalorder %s638, %s641
      %p650 = scmp.eq.s32.totalorder %s51, 2
      %p651 = por %p649, %p650
      %p652 = scmp.ne.s32.totalorder %s641, %s642
      %p653 = scmp.eq.s32.totalorder %s51, 0
      %p654 = por %p652, %p653
      %p655 = scmp.ne.s32.totalorder %s641, %s642
      %p656 = scmp.eq.s32.totalorder %s52, 2
      %p657 = por %p655, %p656
      %p659 = scmp.ne.s32.totalorder %s642, %s658
      %p660 = scmp.eq.s32.totalorder %s52, 0
      %p661 = por %p659, %p660
      %s662 = ssub.s32 %s53, %s65
      %p663 = scmp.eq.s32.totalorder %s662, 0
      %s665 = sadd.s32 %s664, 1
      %s666 = scalar_select %p663, %s664, %s665
      %p669 = pneg %p663
      %p670 = scmp.eq.s32.totalorder %s46, 2
      %p671 = por %p669, %p670
      %p672 = scmp.ne.s32.totalorder %s664, %s667
      %p673 = scmp.eq.s32.totalorder %s46, 0
      %p674 = por %p672, %p673
      %p675 = scmp.ne.s32.totalorder %s664, %s667
      %p676 = scmp.eq.s32.totalorder %s51, 2
      %p677 = por %p675, %p676
      %p678 = scmp.ne.s32.totalorder %s667, %s668
      %p679 = scmp.eq.s32.totalorder %s51, 0
      %p680 = por %p678, %p679
      %p681 = scmp.ne.s32.totalorder %s667, %s668
      %p682 = scmp.eq.s32.totalorder %s52, 2
      %p683 = por %p681, %p682
      %p685 = scmp.ne.s32.totalorder %s668, %s684
      %p686 = scmp.eq.s32.totalorder %s52, 0
      %p687 = por %p685, %p686
      %p688 = scmp.le.s32.totalorder 1, %s46
      %p689 = scmp.lt.s32.totalorder %s46, 4
      %p690 = pnand %p688, %p689
      %p691 = pneg %p690
      // Predicated region
      $region9: #{tpu_custom_call.1} parent=5 // pred_check
        _
      $region10: #{tpu_custom_call.1} parent=5 // pred_check_branch
        %693 = sbr.rel (%p690) target = $region12
      $region11: #{tpu_custom_call.1} parent=5 // pred_region
        %s694 = ssub.s32 %s46, 1
      $region12: #{tpu_custom_call.1} parent=5 // pred_fallthru
        _
      %p695 = scmp.lt.s32.totalorder %s46, 3
      // Predicated region
      $region13: #{tpu_custom_call.1} parent=5 // pred_check
        %p696 = pneg %p695
      $region14: #{tpu_custom_call.1} parent=5 // pred_check_branch
        %698 = sbr.rel (%p696) target = $region16
      $region15: #{tpu_custom_call.1} parent=5 // pred_region
        // Predicated region
        $region17: #{tpu_custom_call.1} parent=15 // pred_check
          %p699 = pneg %p86
        $region18: #{tpu_custom_call.1} parent=15 // pred_check_branch
          %701 = sbr.rel (%p699) target = $region20
        $region19: #{tpu_custom_call.1} parent=15 // pred_region
          %s702 = sand.u32 %s76, 1
          %s703 = scalar_lea.sflag [#allocation3], %s702
          %s704 = sand.u32 %s76, 1
          %s705 = smul.addr %s704, 4
          %s706 = scalar_lea.vmem [#allocation2], %s705
          %s707 = smul.u32 %s53, 3
          %s708 = sadd.s32 %s707, %s54
          %p709 = scmp.lt.s32.totalorder %s708, 0
          %s710 = scalar_select %p709, %s708, 0
          %s712 = ssub.s32 64, 64
          %713 = vsyncadd %s703, %s712
          %s714 = smul.addr %s710, 64
          %s715 = scalar_lea.hbm %s0, %s714
          %s717 = sshll.u32 %s706, 4
          %s718 = int_to_ptr.vmem [resolvable:$true] %s717
          %720 = dma.hbm_to_vmem [thread:$0]  %s715, 64, %s718, %s703
        $region20: #{tpu_custom_call.1} parent=15 // pred_fallthru
          _
        // Predicated region
        $region21: #{tpu_custom_call.1} parent=15 // pred_check
          %p721 = pneg %p120
        $region22: #{tpu_custom_call.1} parent=15 // pred_check_branch
          %723 = sbr.rel (%p721) target = $region24
        $region23: #{tpu_custom_call.1} parent=15 // pred_region
          %s724 = sand.u32 %s46, 1
          %s725 = scalar_lea.sflag [#allocation6], %s724
          %s726 = sand.u32 %s110, 1
          %s727 = smul.addr %s726, 4
          %s728 = scalar_lea.vmem [#allocation5], %s727
          %s729 = smul.u32 %s53, 3
          %s730 = sadd.s32 %s729, %s54
          %p731 = scmp.lt.s32.totalorder %s730, 0
          %s732 = scalar_select %p731, %s730, 0
          %s734 = ssub.s32 64, 64
          %735 = vsyncadd %s725, %s734
          %s736 = smul.addr %s732, 64
          %s737 = scalar_lea.hbm %s1, %s736
          %s739 = sshll.u32 %s728, 4
          %s740 = int_to_ptr.vmem [resolvable:$true] %s739
          %742 = dma.hbm_to_vmem [thread:$0]  %s737, 64, %s740, %s725
        $region24: #{tpu_custom_call.1} parent=15 // pred_fallthru
          _
        // Predicated region
        $region25: #{tpu_custom_call.1} parent=15 // pred_check
          %p743 = pneg %p154
        $region26: #{tpu_custom_call.1} parent=15 // pred_check_branch
          %745 = sbr.rel (%p743) target = $region28
        $region27: #{tpu_custom_call.1} parent=15 // pred_region
          %s746 = sand.u32 %s46, 1
          %s747 = scalar_lea.sflag [#allocation6], %s746
          %s748 = sand.u32 %s144, 1
          %s749 = smul.addr %s748, 4
          %s750 = scalar_lea.vmem [#allocation7], %s749
          %s751 = smul.u32 %s53, 3
          %s752 = sadd.s32 %s751, %s54
          %p753 = scmp.lt.s32.totalorder %s752, 0
          %s754 = scalar_select %p753, %s752, 0
          %s756 = ssub.s32 64, 64
          %757 = vsyncadd %s747, %s756
          %s758 = smul.addr %s754, 64
          %s759 = scalar_lea.hbm %s2, %s758
          %s761 = sshll.u32 %s750, 4
          %s762 = int_to_ptr.vmem [resolvable:$true] %s761
          %764 = dma.hbm_to_vmem [thread:$0]  %s759, 64, %s762, %s747
        $region28: #{tpu_custom_call.1} parent=15 // pred_fallthru
          _
        // Predicated region
        $region29: #{tpu_custom_call.1} parent=15 // pred_check
          %p765 = pneg %p184
        $region30: #{tpu_custom_call.1} parent=15 // pred_check_branch
          %767 = sbr.rel (%p765) target = $region32
        $region31: #{tpu_custom_call.1} parent=15 // pred_region
          %s768 = sand.u32 %s46, 1
          %s769 = scalar_lea.sflag [#allocation9], %s768
          %s770 = sand.u32 %s174, 1
          %s771 = smul.addr %s770, 8
          %s772 = scalar_lea.vmem [#allocation8], %s771
          %s773 = smul.u32 %s53, 3
          %s774 = sadd.s32 %s773, %s54
          %s776 = ssub.s32 128, 128
          %777 = vsyncadd %s769, %s776
          %s778 = smul.addr %s774, 128
          %s779 = scalar_lea.hbm %s3, %s778
          %s781 = sshll.u32 %s772, 4
          %s782 = int_to_ptr.vmem [resolvable:$true] %s781
          %784 = dma.hbm_to_vmem [thread:$0]  %s779, 128, %s782, %s769
        $region32: #{tpu_custom_call.1} parent=15 // pred_fallthru
          _
        // Predicated region
        $region33: #{tpu_custom_call.1} parent=15 // pred_check
          %p785 = pneg %p214
        $region34: #{tpu_custom_call.1} parent=15 // pred_check_branch
          %787 = sbr.rel (%p785) target = $region36
        $region35: #{tpu_custom_call.1} parent=15 // pred_region
          %s788 = sand.u32 %s46, 1
          %s789 = scalar_lea.sflag [#allocation9], %s788
          %s790 = sand.u32 %s204, 1
          %s791 = smul.addr %s790, 8
          %s792 = scalar_lea.vmem [#allocation10], %s791
          %s793 = smul.u32 %s53, 3
          %s794 = sadd.s32 %s793, %s54
          %s796 = ssub.s32 128, 128
          %797 = vsyncadd %s789, %s796
          %s798 = smul.addr %s794, 128
          %s799 = scalar_lea.hbm %s4, %s798
          %s801 = sshll.u32 %s792, 4
          %s802 = int_to_ptr.vmem [resolvable:$true] %s801
          %804 = dma.hbm_to_vmem [thread:$0]  %s799, 128, %s802, %s789
        $region36: #{tpu_custom_call.1} parent=15 // pred_fallthru
          _
        // Predicated region
        $region37: #{tpu_custom_call.1} parent=15 // pred_check
          %p805 = pneg %p248
        $region38: #{tpu_custom_call.1} parent=15 // pred_check_branch
          %807 = sbr.rel (%p805) target = $region40
        $region39: #{tpu_custom_call.1} parent=15 // pred_region
          %s808 = sand.u32 %s46, 1
          %s809 = scalar_lea.sflag [#allocation12], %s808
          %s810 = sand.u32 %s238, 1
          %s811 = smul.addr %s810, 4
          %s812 = scalar_lea.vmem [#allocation11], %s811
          %s813 = smul.u32 %s53, 3
          %s814 = sadd.s32 %s813, %s54
          %p815 = scmp.lt.s32.totalorder %s814, 0
          %s816 = scalar_select %p815, %s814, 0
          %s818 = ssub.s32 64, 64
          %819 = vsyncadd %s809, %s818
          %s820 = smul.addr %s816, 64
          %s821 = scalar_lea.hbm %s5, %s820
          %s823 = sshll.u32 %s812, 4
          %s824 = int_to_ptr.vmem [resolvable:$true] %s823
          %826 = dma.hbm_to_vmem [thread:$0]  %s821, 64, %s824, %s809
        $region40: #{tpu_custom_call.1} parent=15 // pred_fallthru
          _
        // Predicated region
        $region41: #{tpu_custom_call.1} parent=15 // pred_check
          %p827 = pneg %p282
        $region42: #{tpu_custom_call.1} parent=15 // pred_check_branch
          %829 = sbr.rel (%p827) target = $region44
        $region43: #{tpu_custom_call.1} parent=15 // pred_region
          %s830 = sand.u32 %s46, 1
          %s831 = scalar_lea.sflag [#allocation12], %s830
          %s832 = sand.u32 %s272, 1
          %s833 = smul.addr %s832, 4
          %s834 = scalar_lea.vmem [#allocation13], %s833
          %s835 = smul.u32 %s53, 3
          %s836 = sadd.s32 %s835, %s54
          %p837 = scmp.lt.s32.totalorder %s836, 0
          %s838 = scalar_select %p837, %s836, 0
          %s840 = ssub.s32 64, 64
          %841 = vsyncadd %s831, %s840
          %s842 = smul.addr %s838, 64
          %s843 = scalar_lea.hbm %s6, %s842
          %s845 = sshll.u32 %s834, 4
          %s846 = int_to_ptr.vmem [resolvable:$true] %s845
          %848 = dma.hbm_to_vmem [thread:$0]  %s843, 64, %s846, %s831
        $region44: #{tpu_custom_call.1} parent=15 // pred_fallthru
          _
        // Predicated region
        $region45: #{tpu_custom_call.1} parent=15 // pred_check
          %p849 = pneg %p316
        $region46: #{tpu_custom_call.1} parent=15 // pred_check_branch
          %851 = sbr.rel (%p849) target = $region48
        $region47: #{tpu_custom_call.1} parent=15 // pred_region
          %s852 = sand.u32 %s46, 1
          %s853 = scalar_lea.sflag [#allocation15], %s852
          %s854 = sand.u32 %s306, 1
          %s855 = smul.addr %s854, 4
          %s856 = scalar_lea.vmem [#allocation14], %s855
          %s857 = smul.u32 %s53, 3
          %s858 = sadd.s32 %s857, %s54
          %p859 = scmp.lt.s32.totalorder %s858, 0
          %s860 = scalar_select %p859, %s858, 0
          %s862 = ssub.s32 64, 64
          %863 = vsyncadd %s853, %s862
          %s864 = smul.addr %s860, 64
          %s865 = scalar_lea.hbm %s7, %s864
          %s867 = sshll.u32 %s856, 4
          %s868 = int_to_ptr.vmem [resolvable:$true] %s867
          %870 = dma.hbm_to_vmem [thread:$0]  %s865, 64, %s868, %s853
        $region48: #{tpu_custom_call.1} parent=15 // pred_fallthru
          _
        // Predicated region
        $region49: #{tpu_custom_call.1} parent=15 // pred_check
          %p871 = pneg %p350
        $region50: #{tpu_custom_call.1} parent=15 // pred_check_branch
          %873 = sbr.rel (%p871) target = $region52
        $region51: #{tpu_custom_call.1} parent=15 // pred_region
          %s874 = sand.u32 %s46, 1
          %s875 = scalar_lea.sflag [#allocation15], %s874
          %s876 = sand.u32 %s340, 1
          %s877 = smul.addr %s876, 4
          %s878 = scalar_lea.vmem [#allocation16], %s877
          %s879 = smul.u32 %s53, 3
          %s880 = sadd.s32 %s879, %s54
          %p881 = scmp.lt.s32.totalorder %s880, 0
          %s882 = scalar_select %p881, %s880, 0
          %s884 = ssub.s32 64, 64
          %885 = vsyncadd %s875, %s884
          %s886 = smul.addr %s882, 64
          %s887 = scalar_lea.hbm %s8, %s886
          %s889 = sshll.u32 %s878, 4
          %s890 = int_to_ptr.vmem [resolvable:$true] %s889
          %892 = dma.hbm_to_vmem [thread:$0]  %s887, 64, %s890, %s875
        $region52: #{tpu_custom_call.1} parent=15 // pred_fallthru
          _
        // Predicated region
        $region53: #{tpu_custom_call.1} parent=15 // pred_check
          %p893 = pneg %p384
        $region54: #{tpu_custom_call.1} parent=15 // pred_check_branch
          %895 = sbr.rel (%p893) target = $region56
        $region55: #{tpu_custom_call.1} parent=15 // pred_region
          %s896 = sand.u32 %s46, 1
          %s897 = scalar_lea.sflag [#allocation18], %s896
          %s898 = sand.u32 %s374, 1
          %s899 = smul.addr %s898, 4
          %s900 = scalar_lea.vmem [#allocation17], %s899
          %s901 = smul.u32 %s53, 3
          %s902 = sadd.s32 %s901, %s54
          %p903 = scmp.lt.s32.totalorder %s902, 0
          %s904 = scalar_select %p903, %s902, 0
          %s906 = ssub.s32 64, 64
          %907 = vsyncadd %s897, %s906
          %s908 = smul.addr %s904, 64
          %s909 = scalar_lea.hbm %s9, %s908
          %s911 = sshll.u32 %s900, 4
          %s912 = int_to_ptr.vmem [resolvable:$true] %s911
          %914 = dma.hbm_to_vmem [thread:$0]  %s909, 64, %s912, %s897
        $region56: #{tpu_custom_call.1} parent=15 // pred_fallthru
          _
        // Predicated region
        $region57: #{tpu_custom_call.1} parent=15 // pred_check
          %p915 = pneg %p414
        $region58: #{tpu_custom_call.1} parent=15 // pred_check_branch
          %917 = sbr.rel (%p915) target = $region60
        $region59: #{tpu_custom_call.1} parent=15 // pred_region
          %s918 = sand.u32 %s46, 1
          %s919 = scalar_lea.sflag [#allocation18], %s918
          %s920 = sand.u32 %s404, 1
          %s921 = smul.addr %s920, 8
          %s922 = scalar_lea.vmem [#allocation19], %s921
          %s923 = smul.u32 %s53, 3
          %s924 = sadd.s32 %s923, %s54
          %s926 = ssub.s32 128, 128
          %927 = vsyncadd %s919, %s926
          %s928 = smul.addr %s924, 128
          %s929 = scalar_lea.hbm %s10, %s928
          %s931 = sshll.u32 %s922, 4
          %s932 = int_to_ptr.vmem [resolvable:$true] %s931
          %934 = dma.hbm_to_vmem [thread:$0]  %s929, 128, %s932, %s919
        $region60: #{tpu_custom_call.1} parent=15 // pred_fallthru
          _
        // Predicated region
        $region61: #{tpu_custom_call.1} parent=15 // pred_check
          %p935 = pneg %p444
        $region62: #{tpu_custom_call.1} parent=15 // pred_check_branch
          %937 = sbr.rel (%p935) target = $region64
        $region63: #{tpu_custom_call.1} parent=15 // pred_region
          %s938 = sand.u32 %s434, 1
          %s939 = scalar_lea.sflag [#allocation21], %s938
          %s940 = sand.u32 %s434, 1
          %s941 = smul.addr %s940, 8
          %s942 = scalar_lea.vmem [#allocation20], %s941
          %s943 = smul.u32 %s53, 3
          %s944 = sadd.s32 %s943, %s54
          %s946 = ssub.s32 128, 128
          %947 = vsyncadd %s939, %s946
          %s948 = smul.addr %s944, 128
          %s949 = scalar_lea.hbm %s11, %s948
          %s951 = sshll.u32 %s942, 4
          %s952 = int_to_ptr.vmem [resolvable:$true] %s951
          %954 = dma.hbm_to_vmem [thread:$0]  %s949, 128, %s952, %s939
        $region64: #{tpu_custom_call.1} parent=15 // pred_fallthru
          _
        // Predicated region
        $region65: #{tpu_custom_call.1} parent=15 // pred_check
          %p955 = pneg %p478
        $region66: #{tpu_custom_call.1} parent=15 // pred_check_branch
          %957 = sbr.rel (%p955) target = $region68
        $region67: #{tpu_custom_call.1} parent=15 // pred_region
          %s958 = smul.u32 %s53, 3
          %s959 = sadd.s32 %s958, %s54
          %p960 = scmp.lt.s32.totalorder %s959, 0
          %s961 = scalar_select %p960, %s959, 0
          %p962 = scmp.lt.s32.totalorder %s961, 0
          %s963 = scalar_select %p962, %s961, 0
          %s964 = smul.addr %s963, 8
          %s965 = scalar_lea.vmem %s12, %s964
          %s966 = smul.u32 %s53, 3
          %s967 = sadd.s32 %s966, %s54
          %p968 = scmp.lt.s32.totalorder %s967, 0
          %s969 = scalar_select %p968, %s967, 0
        $region68: #{tpu_custom_call.1} parent=15 // pred_fallthru
          _
        // Predicated region
        $region69: #{tpu_custom_call.1} parent=15 // pred_check
          %p970 = pneg %p512
        $region70: #{tpu_custom_call.1} parent=15 // pred_check_branch
          %972 = sbr.rel (%p970) target = $region72
        $region71: #{tpu_custom_call.1} parent=15 // pred_region
          %s973 = smul.u32 %s53, 3
          %s974 = sadd.s32 %s973, %s54
          %p975 = scmp.lt.s32.totalorder %s974, 0
          %s976 = scalar_select %p975, %s974, 0
          %p977 = scmp.lt.s32.totalorder %s976, 0
          %s978 = scalar_select %p977, %s976, 0
          %s979 = smul.addr %s978, 8
          %s980 = scalar_lea.vmem %s13, %s979
          %s981 = smul.u32 %s53, 3
          %s982 = sadd.s32 %s981, %s54
          %p983 = scmp.lt.s32.totalorder %s982, 0
          %s984 = scalar_select %p983, %s982, 0
        $region72: #{tpu_custom_call.1} parent=15 // pred_fallthru
          _
        // Predicated region
        $region73: #{tpu_custom_call.1} parent=15 // pred_check
          %p985 = pneg %p546
        $region74: #{tpu_custom_call.1} parent=15 // pred_check_branch
          %987 = sbr.rel (%p985) target = $region76
        $region75: #{tpu_custom_call.1} parent=15 // pred_region
          %s988 = smul.u32 %s53, 3
          %s989 = sadd.s32 %s988, %s54
          %p990 = scmp.lt.s32.totalorder %s989, 0
          %s991 = scalar_select %p990, %s989, 0
          %p992 = scmp.lt.s32.totalorder %s991, 0
          %s993 = scalar_select %p992, %s991, 0
          %s994 = smul.addr %s993, 4
          %s995 = scalar_lea.vmem %s14, %s994
          %s996 = smul.u32 %s53, 3
          %s997 = sadd.s32 %s996, %s54
          %p998 = scmp.lt.s32.totalorder %s997, 0
          %s999 = scalar_select %p998, %s997, 0
        $region76: #{tpu_custom_call.1} parent=15 // pred_fallthru
          _
        // Predicated region
        $region77: #{tpu_custom_call.1} parent=15 // pred_check
          %p1000 = pneg %p580
        $region78: #{tpu_custom_call.1} parent=15 // pred_check_branch
          %1002 = sbr.rel (%p1000) target = $region80
        $region79: #{tpu_custom_call.1} parent=15 // pred_region
          %s1003 = smul.u32 %s53, 3
          %s1004 = sadd.s32 %s1003, %s54
          %p1005 = scmp.lt.s32.totalorder %s1004, 0
          %s1006 = scalar_select %p1005, %s1004, 0
          %p1007 = scmp.lt.s32.totalorder %s1006, 0
          %s1008 = scalar_select %p1007, %s1006, 0
          %s1009 = smul.addr %s1008, 4
          %s1010 = scalar_lea.vmem %s15, %s1009
          %s1011 = smul.u32 %s53, 3
          %s1012 = sadd.s32 %s1011, %s54
          %p1013 = scmp.lt.s32.totalorder %s1012, 0
          %s1014 = scalar_select %p1013, %s1012, 0
        $region80: #{tpu_custom_call.1} parent=15 // pred_fallthru
          _
        // Predicated region
        $region81: #{tpu_custom_call.1} parent=15 // pred_check
          %p1015 = pneg %p614
        $region82: #{tpu_custom_call.1} parent=15 // pred_check_branch
          %1017 = sbr.rel (%p1015) target = $region84
        $region83: #{tpu_custom_call.1} parent=15 // pred_region
          %s1018 = smul.u32 %s53, 3
          %s1019 = sadd.s32 %s1018, %s54
          %p1020 = scmp.lt.s32.totalorder %s1019, 0
          %s1021 = scalar_select %p1020, %s1019, 0
          %p1022 = scmp.lt.s32.totalorder %s1021, 0
          %s1023 = scalar_select %p1022, %s1021, 0
          %s1024 = scalar_lea.vmem %s16, %s1023
          %s1025 = smul.u32 %s53, 3
          %s1026 = sadd.s32 %s1025, %s54
          %p1027 = scmp.lt.s32.totalorder %s1026, 0
          %s1028 = scalar_select %p1027, %s1026, 0
        $region84: #{tpu_custom_call.1} parent=15 // pred_fallthru
          _
        // Predicated region
        $region85: #{tpu_custom_call.1} parent=15 // pred_check
          %p1029 = pneg %p648
        $region86: #{tpu_custom_call.1} parent=15 // pred_check_branch
          %1031 = sbr.rel (%p1029) target = $region88
        $region87: #{tpu_custom_call.1} parent=15 // pred_region
          %s1032 = smul.u32 %s53, 3
          %s1033 = sadd.s32 %s1032, %s54
          %p1034 = scmp.lt.s32.totalorder %s1033, 0
          %s1035 = scalar_select %p1034, %s1033, 0
          %p1036 = scmp.lt.s32.totalorder %s1035, 0
          %s1037 = scalar_select %p1036, %s1035, 0
          %s1038 = smul.addr %s1037, 4
          %s1039 = scalar_lea.vmem %s17, %s1038
          %s1040 = smul.u32 %s53, 3
          %s1041 = sadd.s32 %s1040, %s54
          %p1042 = scmp.lt.s32.totalorder %s1041, 0
          %s1043 = scalar_select %p1042, %s1041, 0
        $region88: #{tpu_custom_call.1} parent=15 // pred_fallthru
          _
      $region16: #{tpu_custom_call.1} parent=5 // pred_fallthru
        _
      %p1044 = scmp.le.s32.totalorder 1, %s46
      %p1045 = scmp.lt.s32.totalorder %s46, 4
      %p1046 = pnand %p1044, %p1045
      %p1047 = pneg %p1046
      // Predicated region
      $region89: #{tpu_custom_call.1} parent=5 // pred_check
        _
      $region90: #{tpu_custom_call.1} parent=5 // pred_check_branch
        %1049 = sbr.rel (%p1046) target = $region92
      $region91: #{tpu_custom_call.1} parent=5 // pred_region
        %s1050 = ssub.s32 %s46, 1
        %s1051 = sand.u32 %s79, 1
        %s1052 = scalar_lea.sflag [#allocation3], %s1051
        %s1053 = sand.u32 %s79, 1
        %s1054 = smul.addr %s1053, 4
        %s1055 = scalar_lea.vmem [#allocation2], %s1054
        // Predicated region
        $region93: #{tpu_custom_call.1} parent=91 // pred_check
          %p1056 = pneg %p92
        $region94: #{tpu_custom_call.1} parent=91 // pred_check_branch
          %1058 = sbr.rel (%p1056) target = $region96
        $region95: #{tpu_custom_call.1} parent=91 // pred_region
          %1059 = dma.done %s1052, 64
        $region96: #{tpu_custom_call.1} parent=91 // pred_fallthru
          _
        %s1060 = sand.u32 %s51, 1
        %s1061 = scalar_lea.sflag [#allocation6], %s1060
        %s1062 = sand.u32 %s113, 1
        %s1063 = smul.addr %s1062, 4
        %s1064 = scalar_lea.vmem [#allocation5], %s1063
        // Predicated region
        $region97: #{tpu_custom_call.1} parent=91 // pred_check
          %p1065 = pneg %p126
        $region98: #{tpu_custom_call.1} parent=91 // pred_check_branch
          %1067 = sbr.rel (%p1065) target = $region100
        $region99: #{tpu_custom_call.1} parent=91 // pred_region
          %1068 = dma.done %s1061, 64
        $region100: #{tpu_custom_call.1} parent=91 // pred_fallthru
          _
        %s1069 = sand.u32 %s51, 1
        %s1070 = scalar_lea.sflag [#allocation6], %s1069
        %s1071 = sand.u32 %s147, 1
        %s1072 = smul.addr %s1071, 4
        %s1073 = scalar_lea.vmem [#allocation7], %s1072
        // Predicated region
        $region101: #{tpu_custom_call.1} parent=91 // pred_check
          %p1074 = pneg %p160
        $region102: #{tpu_custom_call.1} parent=91 // pred_check_branch
          %1076 = sbr.rel (%p1074) target = $region104
        $region103: #{tpu_custom_call.1} parent=91 // pred_region
          %1077 = dma.done %s1070, 64
        $region104: #{tpu_custom_call.1} parent=91 // pred_fallthru
          _
        %s1078 = sand.u32 %s51, 1
        %s1079 = scalar_lea.sflag [#allocation9], %s1078
        %s1080 = sand.u32 %s177, 1
        %s1081 = smul.addr %s1080, 8
        %s1082 = scalar_lea.vmem [#allocation8], %s1081
        // Predicated region
        $region105: #{tpu_custom_call.1} parent=91 // pred_check
          %p1083 = pneg %p190
        $region106: #{tpu_custom_call.1} parent=91 // pred_check_branch
          %1085 = sbr.rel (%p1083) target = $region108
        $region107: #{tpu_custom_call.1} parent=91 // pred_region
          %1086 = dma.done %s1079, 128
        $region108: #{tpu_custom_call.1} parent=91 // pred_fallthru
          _
        %s1087 = sand.u32 %s51, 1
        %s1088 = scalar_lea.sflag [#allocation9], %s1087
        %s1089 = sand.u32 %s207, 1
        %s1090 = smul.addr %s1089, 8
        %s1091 = scalar_lea.vmem [#allocation10], %s1090
        // Predicated region
        $region109: #{tpu_custom_call.1} parent=91 // pred_check
          %p1092 = pneg %p220
        $region110: #{tpu_custom_call.1} parent=91 // pred_check_branch
          %1094 = sbr.rel (%p1092) target = $region112
        $region111: #{tpu_custom_call.1} parent=91 // pred_region
          %1095 = dma.done %s1088, 128
        $region112: #{tpu_custom_call.1} parent=91 // pred_fallthru
          _
        %s1096 = sand.u32 %s51, 1
        %s1097 = scalar_lea.sflag [#allocation12], %s1096
        %s1098 = sand.u32 %s241, 1
        %s1099 = smul.addr %s1098, 4
        %s1100 = scalar_lea.vmem [#allocation11], %s1099
        // Predicated region
        $region113: #{tpu_custom_call.1} parent=91 // pred_check
          %p1101 = pneg %p254
        $region114: #{tpu_custom_call.1} parent=91 // pred_check_branch
          %1103 = sbr.rel (%p1101) target = $region116
        $region115: #{tpu_custom_call.1} parent=91 // pred_region
          %1104 = dma.done %s1097, 64
        $region116: #{tpu_custom_call.1} parent=91 // pred_fallthru
          _
        %s1105 = sand.u32 %s51, 1
        %s1106 = scalar_lea.sflag [#allocation12], %s1105
        %s1107 = sand.u32 %s275, 1
        %s1108 = smul.addr %s1107, 4
        %s1109 = scalar_lea.vmem [#allocation13], %s1108
        // Predicated region
        $region117: #{tpu_custom_call.1} parent=91 // pred_check
          %p1110 = pneg %p288
        $region118: #{tpu_custom_call.1} parent=91 // pred_check_branch
          %1112 = sbr.rel (%p1110) target = $region120
        $region119: #{tpu_custom_call.1} parent=91 // pred_region
          %1113 = dma.done %s1106, 64
        $region120: #{tpu_custom_call.1} parent=91 // pred_fallthru
          _
        %s1114 = sand.u32 %s51, 1
        %s1115 = scalar_lea.sflag [#allocation15], %s1114
        %s1116 = sand.u32 %s309, 1
        %s1117 = smul.addr %s1116, 4
        %s1118 = scalar_lea.vmem [#allocation14], %s1117
        // Predicated region
        $region121: #{tpu_custom_call.1} parent=91 // pred_check
          %p1119 = pneg %p322
        $region122: #{tpu_custom_call.1} parent=91 // pred_check_branch
          %1121 = sbr.rel (%p1119) target = $region124
        $region123: #{tpu_custom_call.1} parent=91 // pred_region
          %1122 = dma.done %s1115, 64
        $region124: #{tpu_custom_call.1} parent=91 // pred_fallthru
          _
        %s1123 = sand.u32 %s51, 1
        %s1124 = scalar_lea.sflag [#allocation15], %s1123
        %s1125 = sand.u32 %s343, 1
        %s1126 = smul.addr %s1125, 4
        %s1127 = scalar_lea.vmem [#allocation16], %s1126
        // Predicated region
        $region125: #{tpu_custom_call.1} parent=91 // pred_check
          %p1128 = pneg %p356
        $region126: #{tpu_custom_call.1} parent=91 // pred_check_branch
          %1130 = sbr.rel (%p1128) target = $region128
        $region127: #{tpu_custom_call.1} parent=91 // pred_region
          %1131 = dma.done %s1124, 64
        $region128: #{tpu_custom_call.1} parent=91 // pred_fallthru
          _
        %s1132 = sand.u32 %s51, 1
        %s1133 = scalar_lea.sflag [#allocation18], %s1132
        %s1134 = sand.u32 %s377, 1
        %s1135 = smul.addr %s1134, 4
        %s1136 = scalar_lea.vmem [#allocation17], %s1135
        // Predicated region
        $region129: #{tpu_custom_call.1} parent=91 // pred_check
          %p1137 = pneg %p390
        $region130: #{tpu_custom_call.1} parent=91 // pred_check_branch
          %1139 = sbr.rel (%p1137) target = $region132
        $region131: #{tpu_custom_call.1} parent=91 // pred_region
          %1140 = dma.done %s1133, 64
        $region132: #{tpu_custom_call.1} parent=91 // pred_fallthru
          _
        %s1141 = sand.u32 %s51, 1
        %s1142 = scalar_lea.sflag [#allocation18], %s1141
        %s1143 = sand.u32 %s407, 1
        %s1144 = smul.addr %s1143, 8
        %s1145 = scalar_lea.vmem [#allocation19], %s1144
        // Predicated region
        $region133: #{tpu_custom_call.1} parent=91 // pred_check
          %p1146 = pneg %p420
        $region134: #{tpu_custom_call.1} parent=91 // pred_check_branch
          %1148 = sbr.rel (%p1146) target = $region136
        $region135: #{tpu_custom_call.1} parent=91 // pred_region
          %1149 = dma.done %s1142, 128
        $region136: #{tpu_custom_call.1} parent=91 // pred_fallthru
          _
        %s1150 = sand.u32 %s437, 1
        %s1151 = scalar_lea.sflag [#allocation21], %s1150
        %s1152 = sand.u32 %s437, 1
        %s1153 = smul.addr %s1152, 8
        %s1154 = scalar_lea.vmem [#allocation20], %s1153
        // Predicated region
        $region137: #{tpu_custom_call.1} parent=91 // pred_check
          %p1155 = pneg %p450
        $region138: #{tpu_custom_call.1} parent=91 // pred_check_branch
          %1157 = sbr.rel (%p1155) target = $region140
        $region139: #{tpu_custom_call.1} parent=91 // pred_region
          %1158 = dma.done %s1151, 128
        $region140: #{tpu_custom_call.1} parent=91 // pred_fallthru
          _
        %s1159 = sand.u32 %s79, 1
        %s1160 = scalar_lea.sflag [#allocation3], %s1159
        %s1161 = sand.u32 %s79, 1
        %s1162 = smul.addr %s1161, 4
        %s1163 = scalar_lea.vmem [#allocation2], %s1162
        %p1164 = pneg %p92
        %p1165 = pneg %p89
        %s1166 = sand.u32 %s51, 1
        %s1167 = scalar_lea.sflag [#allocation6], %s1166
        %s1168 = sand.u32 %s113, 1
        %s1169 = smul.addr %s1168, 4
        %s1170 = scalar_lea.vmem [#allocation5], %s1169
        %p1171 = pneg %p126
        %p1172 = pneg %p123
        %s1173 = sand.u32 %s51, 1
        %s1174 = scalar_lea.sflag [#allocation6], %s1173
        %s1175 = sand.u32 %s147, 1
        %s1176 = smul.addr %s1175, 4
        %s1177 = scalar_lea.vmem [#allocation7], %s1176
        %p1178 = pneg %p160
        %p1179 = pneg %p157
        %s1180 = sand.u32 %s51, 1
        %s1181 = scalar_lea.sflag [#allocation9], %s1180
        %s1182 = sand.u32 %s177, 1
        %s1183 = smul.addr %s1182, 8
        %s1184 = scalar_lea.vmem [#allocation8], %s1183
        %p1185 = pneg %p190
        %p1186 = pneg %p187
        %s1187 = sand.u32 %s51, 1
        %s1188 = scalar_lea.sflag [#allocation9], %s1187
        %s1189 = sand.u32 %s207, 1
        %s1190 = smul.addr %s1189, 8
        %s1191 = scalar_lea.vmem [#allocation10], %s1190
        %p1192 = pneg %p220
        %p1193 = pneg %p217
        %s1194 = sand.u32 %s51, 1
        %s1195 = scalar_lea.sflag [#allocation12], %s1194
        %s1196 = sand.u32 %s241, 1
        %s1197 = smul.addr %s1196, 4
        %s1198 = scalar_lea.vmem [#allocation11], %s1197
        %p1199 = pneg %p254
        %p1200 = pneg %p251
        %s1201 = sand.u32 %s51, 1
        %s1202 = scalar_lea.sflag [#allocation12], %s1201
        %s1203 = sand.u32 %s275, 1
        %s1204 = smul.addr %s1203, 4
        %s1205 = scalar_lea.vmem [#allocation13], %s1204
        %p1206 = pneg %p288
        %p1207 = pneg %p285
        %s1208 = sand.u32 %s51, 1
        %s1209 = scalar_lea.sflag [#allocation15], %s1208
        %s1210 = sand.u32 %s309, 1
        %s1211 = smul.addr %s1210, 4
        %s1212 = scalar_lea.vmem [#allocation14], %s1211
        %p1213 = pneg %p322
        %p1214 = pneg %p319
        %s1215 = sand.u32 %s51, 1
        %s1216 = scalar_lea.sflag [#allocation15], %s1215
        %s1217 = sand.u32 %s343, 1
        %s1218 = smul.addr %s1217, 4
        %s1219 = scalar_lea.vmem [#allocation16], %s1218
        %p1220 = pneg %p356
        %p1221 = pneg %p353
        %s1222 = sand.u32 %s51, 1
        %s1223 = scalar_lea.sflag [#allocation18], %s1222
        %s1224 = sand.u32 %s377, 1
        %s1225 = smul.addr %s1224, 4
        %s1226 = scalar_lea.vmem [#allocation17], %s1225
        %p1227 = pneg %p390
        %p1228 = pneg %p387
        %s1229 = sand.u32 %s51, 1
        %s1230 = scalar_lea.sflag [#allocation18], %s1229
        %s1231 = sand.u32 %s407, 1
        %s1232 = smul.addr %s1231, 8
        %s1233 = scalar_lea.vmem [#allocation19], %s1232
        %p1234 = pneg %p420
        %p1235 = pneg %p417
        %s1236 = sand.u32 %s437, 1
        %s1237 = scalar_lea.sflag [#allocation21], %s1236
        %s1238 = sand.u32 %s437, 1
        %s1239 = smul.addr %s1238, 8
        %s1240 = scalar_lea.vmem [#allocation20], %s1239
        %p1241 = pneg %p450
        %p1242 = pneg %p447
        %s1243 = smul.u32 %s55, 3
        %s1244 = sadd.s32 %s1243, %s56
        %p1245 = scmp.lt.s32.totalorder %s1244, 0
        %s1246 = scalar_select %p1245, %s1244, 0
        %p1247 = scmp.lt.s32.totalorder %s1246, 0
        %s1248 = scalar_select %p1247, %s1246, 0
        %s1249 = smul.addr %s1248, 8
        %s1250 = scalar_lea.vmem %s12, %s1249
        %p1251 = pneg %p484
        %p1252 = pneg %p481
        %s1253 = smul.u32 %s55, 3
        %s1254 = sadd.s32 %s1253, %s56
        %p1255 = scmp.lt.s32.totalorder %s1254, 0
        %s1256 = scalar_select %p1255, %s1254, 0
        %p1257 = scmp.lt.s32.totalorder %s1256, 0
        %s1258 = scalar_select %p1257, %s1256, 0
        %s1259 = smul.addr %s1258, 8
        %s1260 = scalar_lea.vmem %s13, %s1259
        %p1261 = pneg %p518
        %p1262 = pneg %p515
        %s1263 = smul.u32 %s55, 3
        %s1264 = sadd.s32 %s1263, %s56
        %p1265 = scmp.lt.s32.totalorder %s1264, 0
        %s1266 = scalar_select %p1265, %s1264, 0
        %p1267 = scmp.lt.s32.totalorder %s1266, 0
        %s1268 = scalar_select %p1267, %s1266, 0
        %s1269 = smul.addr %s1268, 4
        %s1270 = scalar_lea.vmem %s14, %s1269
        %p1271 = pneg %p552
        %p1272 = pneg %p549
        %s1273 = smul.u32 %s55, 3
        %s1274 = sadd.s32 %s1273, %s56
        %p1275 = scmp.lt.s32.totalorder %s1274, 0
        %s1276 = scalar_select %p1275, %s1274, 0
        %p1277 = scmp.lt.s32.totalorder %s1276, 0
        %s1278 = scalar_select %p1277, %s1276, 0
        %s1279 = smul.addr %s1278, 4
        %s1280 = scalar_lea.vmem %s15, %s1279
        %p1281 = pneg %p586
        %p1282 = pneg %p583
        %s1283 = smul.u32 %s55, 3
        %s1284 = sadd.s32 %s1283, %s56
        %p1285 = scmp.lt.s32.totalorder %s1284, 0
        %s1286 = scalar_select %p1285, %s1284, 0
        %p1287 = scmp.lt.s32.totalorder %s1286, 0
        %s1288 = scalar_select %p1287, %s1286, 0
        %s1289 = scalar_lea.vmem %s16, %s1288
        %p1290 = pneg %p620
        %p1291 = pneg %p617
        %s1292 = smul.u32 %s55, 3
        %s1293 = sadd.s32 %s1292, %s56
        %p1294 = scmp.lt.s32.totalorder %s1293, 0
        %s1295 = scalar_select %p1294, %s1293, 0
        %p1296 = scmp.lt.s32.totalorder %s1295, 0
        %s1297 = scalar_select %p1296, %s1295, 0
        %s1298 = smul.addr %s1297, 4
        %s1299 = scalar_lea.vmem %s17, %s1298
        %p1300 = pneg %p654
        %p1301 = pneg %p651
        %p1302 = pneg %p680
        %p1303 = pneg %p677
        %s1304 = smul.u32 %s55, 3
        %s1305 = sadd.s32 %s1304, %s56
        %p1306 = scmp.lt.s32.totalorder %s1305, 0
        %s1307 = scalar_select %p1306, %s1305, 0
        %s1308 = smul.u32 %s55, 3
        %s1309 = sadd.s32 %s1308, %s56
        %p1310 = scmp.lt.s32.totalorder %s1309, 0
        %s1311 = scalar_select %p1310, %s1309, 0
        %s1312 = smul.u32 %s55, 3
        %s1313 = sadd.s32 %s1312, %s56
        %p1314 = scmp.lt.s32.totalorder %s1313, 0
        %s1315 = scalar_select %p1314, %s1313, 0
        %s1316 = smul.u32 %s55, 3
        %s1317 = sadd.s32 %s1316, %s56
        %s1318 = smul.u32 %s55, 3
        %s1319 = sadd.s32 %s1318, %s56
        %s1320 = smul.u32 %s55, 3
        %s1321 = sadd.s32 %s1320, %s56
        %p1322 = scmp.lt.s32.totalorder %s1321, 0
        %s1323 = scalar_select %p1322, %s1321, 0
        %s1324 = smul.u32 %s55, 3
        %s1325 = sadd.s32 %s1324, %s56
        %p1326 = scmp.lt.s32.totalorder %s1325, 0
        %s1327 = scalar_select %p1326, %s1325, 0
        %s1328 = smul.u32 %s55, 3
        %s1329 = sadd.s32 %s1328, %s56
        %p1330 = scmp.lt.s32.totalorder %s1329, 0
        %s1331 = scalar_select %p1330, %s1329, 0
        %s1332 = smul.u32 %s55, 3
        %s1333 = sadd.s32 %s1332, %s56
        %p1334 = scmp.lt.s32.totalorder %s1333, 0
        %s1335 = scalar_select %p1334, %s1333, 0
        %s1336 = smul.u32 %s55, 3
        %s1337 = sadd.s32 %s1336, %s56
        %p1338 = scmp.lt.s32.totalorder %s1337, 0
        %s1339 = scalar_select %p1338, %s1337, 0
        %s1340 = smul.u32 %s55, 3
        %s1341 = sadd.s32 %s1340, %s56
        %s1342 = smul.u32 %s55, 3
        %s1343 = sadd.s32 %s1342, %s56
        %s1344 = smul.u32 %s55, 3
        %s1345 = sadd.s32 %s1344, %s56
        %p1346 = scmp.lt.s32.totalorder %s1345, 0
        %s1347 = scalar_select %p1346, %s1345, 0
        %p1348 = scmp.lt.s32.totalorder %s1347, 0
        %s1349 = scalar_select %p1348, %s1347, 0
        %s1350 = smul.addr %s1349, 8
        %s1351 = scalar_lea.vmem %s12, %s1350
        %s1352 = smul.u32 %s55, 3
        %s1353 = sadd.s32 %s1352, %s56
        %p1354 = scmp.lt.s32.totalorder %s1353, 0
        %s1355 = scalar_select %p1354, %s1353, 0
        %s1356 = smul.u32 %s55, 3
        %s1357 = sadd.s32 %s1356, %s56
        %p1358 = scmp.lt.s32.totalorder %s1357, 0
        %s1359 = scalar_select %p1358, %s1357, 0
        %p1360 = scmp.lt.s32.totalorder %s1359, 0
        %s1361 = scalar_select %p1360, %s1359, 0
        %s1362 = smul.addr %s1361, 8
        %s1363 = scalar_lea.vmem %s13, %s1362
        %s1364 = smul.u32 %s55, 3
        %s1365 = sadd.s32 %s1364, %s56
        %p1366 = scmp.lt.s32.totalorder %s1365, 0
        %s1367 = scalar_select %p1366, %s1365, 0
        %s1368 = smul.u32 %s55, 3
        %s1369 = sadd.s32 %s1368, %s56
        %p1370 = scmp.lt.s32.totalorder %s1369, 0
        %s1371 = scalar_select %p1370, %s1369, 0
        %p1372 = scmp.lt.s32.totalorder %s1371, 0
        %s1373 = scalar_select %p1372, %s1371, 0
        %s1374 = smul.addr %s1373, 4
        %s1375 = scalar_lea.vmem %s14, %s1374
        %s1376 = smul.u32 %s55, 3
        %s1377 = sadd.s32 %s1376, %s56
        %p1378 = scmp.lt.s32.totalorder %s1377, 0
        %s1379 = scalar_select %p1378, %s1377, 0
        %s1380 = smul.u32 %s55, 3
        %s1381 = sadd.s32 %s1380, %s56
        %p1382 = scmp.lt.s32.totalorder %s1381, 0
        %s1383 = scalar_select %p1382, %s1381, 0
        %p1384 = scmp.lt.s32.totalorder %s1383, 0
        %s1385 = scalar_select %p1384, %s1383, 0
        %s1386 = smul.addr %s1385, 4
        %s1387 = scalar_lea.vmem %s15, %s1386
        %s1388 = smul.u32 %s55, 3
        %s1389 = sadd.s32 %s1388, %s56
        %p1390 = scmp.lt.s32.totalorder %s1389, 0
        %s1391 = scalar_select %p1390, %s1389, 0
        %s1392 = smul.u32 %s55, 3
        %s1393 = sadd.s32 %s1392, %s56
        %p1394 = scmp.lt.s32.totalorder %s1393, 0
        %s1395 = scalar_select %p1394, %s1393, 0
        %p1396 = scmp.lt.s32.totalorder %s1395, 0
        %s1397 = scalar_select %p1396, %s1395, 0
        %s1398 = scalar_lea.vmem %s16, %s1397
        %s1399 = smul.u32 %s55, 3
        %s1400 = sadd.s32 %s1399, %s56
        %p1401 = scmp.lt.s32.totalorder %s1400, 0
        %s1402 = scalar_select %p1401, %s1400, 0
        %s1403 = smul.u32 %s55, 3
        %s1404 = sadd.s32 %s1403, %s56
        %p1405 = scmp.lt.s32.totalorder %s1404, 0
        %s1406 = scalar_select %p1405, %s1404, 0
        %p1407 = scmp.lt.s32.totalorder %s1406, 0
        %s1408 = scalar_select %p1407, %s1406, 0
        %s1409 = smul.addr %s1408, 4
        %s1410 = scalar_lea.vmem %s17, %s1409
        %s1411 = smul.u32 %s55, 3
        %s1412 = sadd.s32 %s1411, %s56
        %p1413 = scmp.lt.s32.totalorder %s1412, 0
        %s1414 = scalar_select %p1413, %s1412, 0
        %s1415 = smul.u32 13, %s55
        %s1416 = smul.u32 %s55, 3
        %s1417 = sadd.s32 %s1416, %s56
        %p1418 = scmp.eq.s32.totalorder %s56, 0
        // Predicated region
        $region141: #{tpu_custom_call.1} parent=91 // pred_check
          %p1419 = pneg %p1418
        $region142: #{tpu_custom_call.1} parent=91 // pred_check_branch
          %1421 = sbr.rel (%p1419) target = $region144
        $region143: #{tpu_custom_call.1} parent=91 // pred_region
          %1422 = vst [vmem:[#allocation22] sm:$0xff] 0.0
          %1423 = vst [vmem:[#allocation22 + $0x8] sm:$0xff] 0.0
          %1424 = vst [vmem:[#allocation22 + $0x10] sm:$0xff] 0.0
          %1425 = vst [vmem:[#allocation22 + $0x18] sm:$0xff] 0.0
          %1426 = vst [vmem:[#allocation22 + $0x20] sm:$0xff] 0.0
          %1427 = vst [vmem:[#allocation22 + $0x28] sm:$0xff] 0.0
          %1428 = vst [vmem:[#allocation22 + $0x30] sm:$0xff] 0.0
          %1429 = vst [vmem:[#allocation22 + $0x38] sm:$0xff] 0.0
          %1430 = vst [vmem:[#allocation22 + $0x40] sm:$0xff] 0.0
          %1431 = vst [vmem:[#allocation22 + $0x48] sm:$0xff] 0.0
          %1432 = vst [vmem:[#allocation22 + $0x50] sm:$0xff] 0.0
          %1433 = vst [vmem:[#allocation22 + $0x58] sm:$0xff] 0.0
          %1434 = vst [vmem:[#allocation22 + $0x60] sm:$0xff] 0.0
        $region144: #{tpu_custom_call.1} parent=91 // pred_fallthru
          _
        %v1435 = vld [vmem:[%s1082] sm:$0xff]
        %v1436 = vld [vmem:[%s1091] sm:$0xff]
        %v1437 = vsub.f32 %v1435, %v1436
        %v1438 = vmul.f32 %v1437, %v1437
        %v1439 = vld [vmem:[#allocation22 + $0x10] sm:$0xff]
        %v1440 = vadd.f32 %v1439, %v1438
        %1441 = vst [vmem:[#allocation22 + $0x10] sm:$0xff] %v1440
        %v1442 = vld [vmem:[%s1145] sm:$0xff]
        %v1443 = vld [vmem:[%s1154] sm:$0xff]
        %v1444 = vsub.f32 %v1442, %v1443
        %v1445 = vand.u32 2147483647, %v1444
        %vm1446 = vcmp.lt.f32.partialorder %v1445, 1.0
        %v1447 = vmul.f32 %v1444, 0.5
        %v1448 = vmul.f32 %v1447, %v1444
        %v1449 = vsub.f32 %v1445, 0.5
        %v1450 = vsel %vm1446, %v1448, %v1449
        %v1451 = vld [vmem:[#allocation22 + $0x40] sm:$0xff]
        %v1452 = vadd.f32 %v1451, %v1450
        %1453 = vst [vmem:[#allocation22 + $0x40] sm:$0xff] %v1452
        %p1454 = scmp.lt.s32.totalorder %s1417, 1
        // Predicated region
        $region145: #{tpu_custom_call.1} parent=91 // pred_check
          %p1455 = pneg %p1454
        $region146: #{tpu_custom_call.1} parent=91 // pred_check_branch
          %1457 = sbr.rel (%p1455) target = $region148
        $region147: #{tpu_custom_call.1} parent=91 // pred_region
          %v1458 = vld [vmem:[%s1055] sm:$0x7]
          %v1459 = vmul.f32 %v1458, %v1458
          %vm1460 = vcmask 1042432
          %v1461 = vsel %vm1460, %v1459, 0.0
          %v1462 = vrot.slane %v1461, 4
          %v1463 = vadd.f32 %v1461, %v1462
          %v1464 = vrot.slane %v1463, 2
          %v1465 = vadd.f32 %v1463, %v1464
          %v1466 = vrot.slane %v1465, 1
          %v1467 = vadd.f32 %v1465, %v1466
          %v1468 = vrsqrt.pop %v1467
          %v1469 = vmul.f32 %v1467, %v1468
          %vm1470 = vcmp.eq.f32.partialorder %v1467, inf
          %v1471 = vsel %vm1470, %v1467, %v1469
          %vm1472 = vcmp.eq.f32.partialorder %v1467, 0.0
          %v1473 = vand.u32 %v1467, 2147483648
          %v1474 = vsel %vm1472, %v1473, %v1471
          %v1475 = vld [vmem:[#allocation22] sm:$0x1]
          %v1476 = vadd.f32 %v1475, %v1474
          %1477 = vst [vmem:[#allocation22] sm:$0x1] %v1476
          %v1478 = vld [vmem:[%s1064] sm:$0x7]
          %v1479 = vld [vmem:[%s1073] sm:$0x7]
          %v1480 = vadd.f32 %v1478, %v1479
          %v1481 = vmul.f32 %v1480, %v1480
          %v1482 = vsel %vm1460, %v1481, 0.0
          %v1483 = vrot.slane %v1482, 4
          %v1484 = vadd.f32 %v1482, %v1483
          %v1485 = vrot.slane %v1484, 2
          %v1486 = vadd.f32 %v1484, %v1485
          %v1487 = vrot.slane %v1486, 1
          %v1488 = vadd.f32 %v1486, %v1487
          %v1489 = vrsqrt.pop %v1488
          %v1490 = vmul.f32 %v1488, %v1489
          %vm1491 = vcmp.eq.f32.partialorder %v1488, inf
          %v1492 = vsel %vm1491, %v1488, %v1490
          %vm1493 = vcmp.eq.f32.partialorder %v1488, 0.0
          %v1494 = vand.u32 %v1488, 2147483648
          %v1495 = vsel %vm1493, %v1494, %v1492
          %v1496 = vld [vmem:[#allocation22 + $0x8] sm:$0x1]
          %v1497 = vadd.f32 %v1496, %v1495
          %1498 = vst [vmem:[#allocation22 + $0x8] sm:$0x1] %v1497
          %v1499 = vld [vmem:[%s1100] sm:$0x7]
          %v1500 = vmul.f32 %v1499, %v1499
          %v1501 = vsel %vm1460, %v1500, 0.0
          %v1502 = vrot.slane %v1501, 4
          %v1503 = vadd.f32 %v1501, %v1502
          %v1504 = vrot.slane %v1503, 2
          %v1505 = vadd.f32 %v1503, %v1504
          %v1506 = vrot.slane %v1505, 1
          %v1507 = vadd.f32 %v1505, %v1506
          %v1508 = vrsqrt.pop %v1507
          %v1509 = vmul.f32 %v1507, %v1508
          %vm1510 = vcmp.eq.f32.partialorder %v1507, inf
          %v1511 = vsel %vm1510, %v1507, %v1509
          %vm1512 = vcmp.eq.f32.partialorder %v1507, 0.0
          %v1513 = vand.u32 %v1507, 2147483648
          %v1514 = vsel %vm1512, %v1513, %v1511
          %v1515 = vsub.f32 %v1514, 1.0
          %v1516 = vmul.f32 %v1515, %v1515
          %v1517 = vld [vmem:[#allocation22 + $0x18] sm:$0x1]
          %v1518 = vadd.f32 %v1517, %v1516
          %1519 = vst [vmem:[#allocation22 + $0x18] sm:$0x1] %v1518
          %v1520 = vld [vmem:[%s1109] sm:$0x7]
          %v1521 = vmul.f32 %v1520, %v1520
          %v1522 = vsel %vm1460, %v1521, 0.0
          %v1523 = vrot.slane %v1522, 4
          %v1524 = vadd.f32 %v1522, %v1523
          %v1525 = vrot.slane %v1524, 2
          %v1526 = vadd.f32 %v1524, %v1525
          %v1527 = vrot.slane %v1526, 1
          %v1528 = vadd.f32 %v1526, %v1527
          %v1529 = vrsqrt.pop %v1528
          %v1530 = vmul.f32 %v1528, %v1529
          %vm1531 = vcmp.eq.f32.partialorder %v1528, inf
          %v1532 = vsel %vm1531, %v1528, %v1530
          %vm1533 = vcmp.eq.f32.partialorder %v1528, 0.0
          %v1534 = vand.u32 %v1528, 2147483648
          %v1535 = vsel %vm1533, %v1534, %v1532
          %v1536 = vsub.f32 %v1535, 1.0
          %v1537 = vmul.f32 %v1536, %v1536
          %v1538 = vld [vmem:[#allocation22 + $0x20] sm:$0x1]
          %v1539 = vadd.f32 %v1538, %v1537
          %1540 = vst [vmem:[#allocation22 + $0x20] sm:$0x1] %v1539
          %v1541 = vld [vmem:[%s1118] sm:$0x7]
          %v1542 = vmul.f32 %v1541, %v1541
          %v1543 = vsel %vm1460, %v1542, 0.0
          %v1544 = vrot.slane %v1543, 4
          %v1545 = vadd.f32 %v1543, %v1544
          %v1546 = vrot.slane %v1545, 2
          %v1547 = vadd.f32 %v1545, %v1546
          %v1548 = vrot.slane %v1547, 1
          %v1549 = vadd.f32 %v1547, %v1548
          %v1550 = vrsqrt.pop %v1549
          %v1551 = vmul.f32 %v1549, %v1550
          %vm1552 = vcmp.eq.f32.partialorder %v1549, inf
          %v1553 = vsel %vm1552, %v1549, %v1551
          %vm1554 = vcmp.eq.f32.partialorder %v1549, 0.0
          %v1555 = vand.u32 %v1549, 2147483648
          %v1556 = vsel %vm1554, %v1555, %v1553
          %v1557 = vld [vmem:[#allocation22 + $0x28] sm:$0x1]
          %v1558 = vadd.f32 %v1557, %v1556
          %1559 = vst [vmem:[#allocation22 + $0x28] sm:$0x1] %v1558
          %v1560 = vld [vmem:[%s1127] sm:$0x7]
          %v1561 = vmul.f32 %v1560, %v1560
          %v1562 = vsel %vm1460, %v1561, 0.0
          %v1563 = vrot.slane %v1562, 4
          %v1564 = vadd.f32 %v1562, %v1563
          %v1565 = vrot.slane %v1564, 2
          %v1566 = vadd.f32 %v1564, %v1565
          %v1567 = vrot.slane %v1566, 1
          %v1568 = vadd.f32 %v1566, %v1567
          %v1569 = vrsqrt.pop %v1568
          %v1570 = vmul.f32 %v1568, %v1569
          %vm1571 = vcmp.eq.f32.partialorder %v1568, inf
          %v1572 = vsel %vm1571, %v1568, %v1570
          %vm1573 = vcmp.eq.f32.partialorder %v1568, 0.0
          %v1574 = vand.u32 %v1568, 2147483648
          %v1575 = vsel %vm1573, %v1574, %v1572
          %v1576 = vld [vmem:[#allocation22 + $0x30] sm:$0x1]
          %v1577 = vadd.f32 %v1576, %v1575
          %1578 = vst [vmem:[#allocation22 + $0x30] sm:$0x1] %v1577
          %v1579 = vld [vmem:[%s1136] sm:$0x7]
          %v1580 = vmul.f32 %v1579, %v1579
          %v1581 = vsel %vm1460, %v1580, 0.0
          %v1582 = vrot.slane %v1581, 4
          %v1583 = vadd.f32 %v1581, %v1582
          %v1584 = vrot.slane %v1583, 2
          %v1585 = vadd.f32 %v1583, %v1584
          %v1586 = vrot.slane %v1585, 1
          %v1587 = vadd.f32 %v1585, %v1586
          %v1588 = vrsqrt.pop %v1587
          %v1589 = vmul.f32 %v1587, %v1588
          %vm1590 = vcmp.eq.f32.partialorder %v1587, inf
          %v1591 = vsel %vm1590, %v1587, %v1589
          %vm1592 = vcmp.eq.f32.partialorder %v1587, 0.0
          %v1593 = vand.u32 %v1587, 2147483648
          %v1594 = vsel %vm1592, %v1593, %v1591
          %v1595 = vsub.f32 %v1594, 1.0
          %v1596 = vmul.f32 %v1595, %v1595
          %v1597 = vld [vmem:[#allocation22 + $0x38] sm:$0x1]
          %v1598 = vadd.f32 %v1597, %v1596
          %1599 = vst [vmem:[#allocation22 + $0x38] sm:$0x1] %v1598
          %v1600 = vld [vmem:[%s1351] sm:$0xff]
          %v1601 = vadd.f32 %v1600, 0.1
          %v1602 = vsub.f32 1.1, %v1600
          %v1603 = vmul.f32 %v1601, %v1602
          %v1604 = vlog2.pop %v1603
          %v1605 = vmul.f32 %v1604, 0.6931472
          %v1606 = vadd.f32 %v1605, 2.20727
          %v1607 = vld [vmem:[#allocation22 + $0x48] sm:$0xff]
          %v1608 = vadd.f32 %v1607, %v1606
          %1609 = vst [vmem:[#allocation22 + $0x48] sm:$0xff] %v1608
          %v1610 = vld [vmem:[%s1363] sm:$0xff]
          %v1611 = vsub.f32 0.0005, %v1610
          %v1612 = vmax.f32 %v1611, 0.0
          %v1613 = vld [vmem:[#allocation22 + $0x50] sm:$0xff]
          %v1614 = vadd.f32 %v1613, %v1612
          %1615 = vst [vmem:[#allocation22 + $0x50] sm:$0xff] %v1614
          %v1616 = vld [vmem:[%s1387] sm:$0x7]
          %v1617 = vld [vmem:[%s1375] sm:$0x7]
          %v1618 = vsub.f32 %v1616, %v1617
          %v1619 = vld [vmem:[%s1398] sm:$0x1]
          %v1620 = vmul.f32 %v1618, %v1618
          %v1622 = vlaneseq
          %v1623 = vshrl.u32 %v1622, 7
          %v1624 = vsub.s32 0, %v1623
          %v1625 = vrot.slane %v1619, %v1624
          %v1627 = vmul.f32 %v1620, %v1625
          %v1628 = vld [vmem:[#allocation22 + $0x58] sm:$0x7]
          %v1629 = vadd.f32 %v1628, %v1627
          %1630 = vst [vmem:[#allocation22 + $0x58] sm:$0x7] %v1629
          %v1631 = vld [vmem:[#allocation22 + $0x5b] sm:$0x1]
          %v1632 = vadd.f32 %v1631, %v1619
          %1633 = vst [vmem:[#allocation22 + $0x5b] sm:$0x1] %v1632
          %v1634 = vld [vmem:[%s1410] sm:$0x7]
          %v1635 = vld [vmem:[%s1375] sm:$0x7]
          %v1636 = vsub.f32 %v1634, %v1635
          %v1637 = vmul.f32 %v1636, %v1636
          %v1638 = vld [vmem:[#allocation22 + $0x60] sm:$0x7]
          %v1639 = vadd.f32 %v1638, %v1637
          %1640 = vst [vmem:[#allocation22 + $0x60] sm:$0x7] %v1639
        $region148: #{tpu_custom_call.1} parent=91 // pred_fallthru
          _
        // Predicated region
        $region149: #{tpu_custom_call.1} parent=91 // pred_check
          %p1641 = pneg %p677
        $region150: #{tpu_custom_call.1} parent=91 // pred_check_branch
          %1643 = sbr.rel (%p1641) target = $region152
        $region151: #{tpu_custom_call.1} parent=91 // pred_region
          %s1644 = smul.u32 13, %s55
          %s1646 = ssub.s32 1664, 1664
          %1647 = vsyncadd [#allocation4], %s1646
          %s1648 = smul.addr %s1644, 128
          %s1649 = scalar_lea.hbm %s18, %s1648
          %s1650 = sshll.u32 [#allocation22], 4
          %s1651 = int_to_ptr.vmem [resolvable:$true] %s1650
          %1656 = dma.vmem_to_hbm [thread:$0]  %s1651, 1664, %s1649, [#allocation4], 128, 128, 8
        $region152: #{tpu_custom_call.1} parent=91 // pred_fallthru
          _
        // Predicated region
        $region153: #{tpu_custom_call.1} parent=91 // pred_check
          %p1657 = pneg %p677
        $region154: #{tpu_custom_call.1} parent=91 // pred_check_branch
          %1659 = sbr.rel (%p1657) target = $region156
        $region155: #{tpu_custom_call.1} parent=91 // pred_region
          %1660 = dma.done [#allocation4], 1664
        $region156: #{tpu_custom_call.1} parent=91 // pred_fallthru
          _
      $region92: #{tpu_custom_call.1} parent=5 // pred_fallthru
        _
      %p1661 = scmp.le.s32.totalorder 2, %s46
      // Predicated region
      $region157: #{tpu_custom_call.1} parent=5 // pred_check
        %p1662 = pneg %p1661
      $region158: #{tpu_custom_call.1} parent=5 // pred_check_branch
        %1664 = sbr.rel (%p1662) target = $region160
      $region159: #{tpu_custom_call.1} parent=5 // pred_region
        %s1665 = ssub.s32 %s46, 2
      $region160: #{tpu_custom_call.1} parent=5 // pred_fallthru
        _
    $region6: #{tpu_custom_call.1} parent=1 // loop_footer
      %s50 = sadd.s32 1, %s46
    $region7: #{tpu_custom_call.1} parent=1 // loop_footer_branch
      %45 = sbr.rel target = $region3
    $region8: #{tpu_custom_call.1} parent=1 // loop_exit
      _
    %1666 = vsyncpa [#allocation3], 1
    %s1667 = scalar_lea.sflag [#allocation3], 1
    %1668 = vsyncpa %s1667, 1
    %1669 = vsyncpa [#allocation6], 1
    %s1670 = scalar_lea.sflag [#allocation6], 1
    %1671 = vsyncpa %s1670, 1
    %1672 = vsyncpa [#allocation9], 1
    %s1673 = scalar_lea.sflag [#allocation9], 1
    %1674 = vsyncpa %s1673, 1
    %1675 = vsyncpa [#allocation12], 1
    %s1676 = scalar_lea.sflag [#allocation12], 1
    %1677 = vsyncpa %s1676, 1
    %1678 = vsyncpa [#allocation15], 1
    %s1679 = scalar_lea.sflag [#allocation15], 1
    %1680 = vsyncpa %s1679, 1
    %1681 = vsyncpa [#allocation18], 1
    %s1682 = scalar_lea.sflag [#allocation18], 1
    %1683 = vsyncpa %s1682, 1
    %1684 = vsyncpa [#allocation21], 1
    %s1685 = scalar_lea.sflag [#allocation21], 1
    %1686 = vsyncpa %s1685, 1
    %1687 = vsyncpa [#allocation4], 1
    %s1688 = scalar_lea.sflag [#allocation4], 1
    %1689 = vsyncpa %s1688, 1

</llo_original>
